<compile_context>
chip_gen: v6e
topology: v6e:2x2x1
jax: 0.10.0
libtpu: 0.0.40
codegen_flags: <defaults>
</compile_context>

<pallas_src>
import functools

import jax
import jax.numpy as jnp
from jax.experimental import pallas as pl
from jax.experimental.pallas import tpu as pltpu


# ----------------------------------------------------------------------------
# Fused Pallas kernel: all conv layers + activation + height max-pool
# ----------------------------------------------------------------------------
def _uencoder_fused_kernel(x_ref, *refs, P, act):
    """Bblk images through the whole encoder.

    x_ref    : (Bblk, H, Lin)        input slab, layout (b, h, w*C + c),
                                     lane-padded with zeros up to Lin
    refs     : per layer (B_ref, bias_ref), then o_ref, then xpad scratch
        B_ref    : (KH, K_l, W*cout)  bf16 banded weights (conv over W & Cin
                                      folded into one contraction dim)
        bias_ref : (1, W*cout)        f32 bias tiled over w
    o_ref    : (Bblk, H//P, W*Cout_last)
    xpad_ref : (Bblk, H + KH - 1, Kpad)  zero-padded activation scratch (VMEM)
    """
    L = (len(refs) - 2) // 2
    o_ref = refs[2 * L]
    xpad_ref = refs[2 * L + 1]

    Bblk, H, Lin = x_ref.shape
    KH = refs[0].shape[0]
    pt = (KH - 1) // 2            # top 'same' padding (PyTorch: left=(k-1)//2)
    M = Bblk * H                  # MXU M dimension

    # Zero the padded scratch ONCE per grid step.  Pad rows/lanes stay zero
    # across layers; only the interior rows [pt, pt+H) are overwritten below.
    xpad_ref[...] = jnp.zeros(xpad_ref.shape, jnp.float32)

    # Interior <- input slab (lane-dense store; the zero lane-padding of the
    # input keeps layer-0's right W-pad columns zero).
    xpad_ref[:, pt:pt + H, 0:Lin] = x_ref[...]
    written = Lin                 # interior lanes [0, written) have been stored

    cur = None
    for l in range(L):
        b_ref = refs[2 * l]
        bias_ref = refs[2 * l + 1]
        Kl = b_ref.shape[1]       # (W + KW - 1) * cin_l
        wdt = b_ref.dtype

        if l > 0:
            need = cur.shape[-1]  # W * cin_l  (== W * cout_{l-1})
            if written > need:
                # A narrower layer after a wider one: re-zero the stale strip
                # falling inside this layer's contraction range.  (Dead code
                # for the 4->8->8 schedule; kept as a correctness guard.)
                xpad_ref[:, pt:pt + H, need:written] = jnp.zeros(
                    (Bblk, H, written - need), jnp.float32)
                written = need
            xpad_ref[:, pt:pt + H, 0:need] = cur.reshape(Bblk, H, need)
            written = max(written, need)

        # KH dense MXU matmuls: (M, K_l) x (K_l, W*cout), lane-dense output.
        # Accumulator starts from tap 0's dot (no zeros materialization).
        acc = None
        for i in range(KH):
            lhs = xpad_ref[:, i:i + H, 0:Kl].reshape(M, Kl).astype(wdt)
            d = jnp.dot(lhs, b_ref[i], preferred_element_type=jnp.float32)
            acc = d if acc is None else acc + d
        acc = acc + bias_ref[...]                    # (1, W*cout) broadcasts

        if l < L - 1:   # activation after every layer except the final conv
            acc = jnp.maximum(acc, 0.0) if act == "relu" else jax.nn.sigmoid(acc)
        cur = acc

    # MaxPool2d((P, 1)): pool over H only, floor behavior like PyTorch.
    Hout = H // P
    wc = cur.shape[-1]
    pooled = jnp.max(
        cur.reshape(Bblk, H, wc)[:, :Hout * P].reshape(Bblk, Hout, P, wc),
        axis=2)
    o_ref[...] = pooled.astype(o_ref.dtype)          # single lane-dense store


# ----------------------------------------------------------------------------
# One-time parameter preparation (hoisted out of the jitted forward)
# ----------------------------------------------------------------------------
def _banded_weights(w, W):
    """Fold the conv over W (and Cin) into a banded matrix per kernel row.

    w: (KH, KW, Cin, Cout) -> (KH, Wp*Cin, W*Cout) with Wp = W + KW - 1 and
       B[i, q*Cin + ci, wo*Cout + co] = w[i, q - wo + pw, ci, co] if valid,
    where q indexes the activation column in the scratch (real data at
    q in [0, W); q >= W are the zeroed right-pad columns) and pw = (KW-1)//2.
    The left 'same' pad is folded out of the band (q never negative).
    """
    KH, KW, Cin, Cout = w.shape
    Wp = W + KW - 1
    pw = (KW - 1) // 2
    q = jnp.arange(Wp)[:, None]                      # scratch column
    wo = jnp.arange(W)[None, :]                      # output column
    j = q - wo + pw                                  # kernel tap along W
    valid = ((j >= 0) & (j < KW)).astype(w.dtype)
    jc = jnp.clip(j, 0, KW - 1)
    band = w[:, jc] * valid[None, :, :, None, None]  # (KH, Wp, W, Cin, Cout)
    return band.transpose(0, 1, 3, 2, 4).reshape(KH, Wp * Cin, W * Cout)


def prepare_uencoder_params(params, W, weight_dtype=jnp.bfloat16):
    """Build banded bf16 weights + tiled f32 biases ONCE (outside the forward)."""
    prepped = []
    for w, b in params:
        cout = w.shape[3]
        B = _banded_weights(w.astype(jnp.float32), W).astype(weight_dtype)
        bias = jnp.tile(b.astype(jnp.float32), W).reshape(1, W * cout)
        prepped.append((B, bias))
    return tuple(prepped)


# ----------------------------------------------------------------------------
# UEncoder: parameter init + forward
# ----------------------------------------------------------------------------
def init_uencoder_params(key, in_channels, out_channels, kernel_size,
                         middle_layer_filter, depth):
    """Deterministic init mimicking PyTorch Conv2d default (uniform +-1/sqrt(fan_in))."""
    kh = kw = kernel_size
    params = []
    cin = in_channels
    chans = [middle_layer_filter] * depth + [out_channels]
    for cout in chans:
        key, k_w, k_b = jax.random.split(key, 3)
        fan_in = cin * kh * kw
        bound = 1.0 / (fan_in ** 0.5)
        # PyTorch weight layout (Cout, Cin, KH, KW) -> (KH, KW, Cin, Cout)
        w_oihw = jax.random.uniform(k_w, (cout, cin, kh, kw), jnp.float32,
                                    -bound, bound)
        b = jax.random.uniform(k_b, (cout,), jnp.float32, -bound, bound)
        params.append((jnp.transpose(w_oihw, (2, 3, 1, 0)), b))
        cin = cout
    return params


@functools.partial(jax.jit, static_argnums=(2, 3))
def uencoder_forward(x_nchw, prepped_params, pooling_size, activation):
    """Forward of UEncoder.  Input/output in NCHW like PyTorch."""
    N, Cin0, H, W = x_nchw.shape
    KH = prepped_params[0][0].shape[0]
    KW = KH                                   # square kernels (single kernel_size)
    Wp = W + KW - 1

    layer_cout = tuple(int(bias.shape[1]) // W for _, bias in prepped_params)
    layer_cin = (Cin0,) + layer_cout[:-1]
    for (B, _), cin in zip(prepped_params, layer_cin):
        assert B.shape[1] == Wp * cin, "params were prepared for a different W"

    Cmax = max(layer_cin)
    Kpad = Wp * Cmax                          # scratch lane width (covers all K_l)
    Cout_last = layer_cout[-1]
    Hout = H // pooling_size
    Hp = H + KH - 1

    # Batch several images per grid step so M = Bblk*H fills MXU rows and the
    # per-step overhead is amortized.  (With more images than 128/H, the grid
    # keeps multiple steps so v7x's two TensorCores both get work.)
    Bblk = max(1, min(N, pl.cdiv(128, H)))
    G = pl.cdiv(N, Bblk)
    N_pad = G * Bblk

    # Lane-pad the input slab (zeros) up to a multiple of 128 (capped at Kpad)
    # so the layer-0 DMA and the interior scratch store are lane-dense.
    Lin = min(Kpad, ((W * Cin0 + 127) // 128) * 128)

    # NCHW -> (N, H, W*Cin) channels-last slab (tiny one-off transpose).
    x = jnp.transpose(x_nchw.astype(jnp.float32), (0, 2, 3, 1)).reshape(
        N, H, W * Cin0)
    if Lin > W * Cin0 or N_pad > N:
        x = jnp.pad(x, ((0, N_pad - N), (0, 0), (0, Lin - W * Cin0)))

    inputs = [x]
    in_specs = [pl.BlockSpec((Bblk, H, Lin), lambda g: (g, 0, 0))]
    for B, bias in prepped_params:
        inputs += [B, bias]
        in_specs += [pl.BlockSpec(B.shape, lambda g: (0, 0, 0)),
                     pl.BlockSpec(bias.shape, lambda g: (0, 0))]

    kernel = functools.partial(_uencoder_fused_kernel,
                               P=pooling_size, act=activation)

    out = pl.pallas_call(
        kernel,
        out_shape=jax.ShapeDtypeStruct((N_pad, Hout, W * Cout_last), jnp.float32),
        grid=(G,),
        in_specs=in_specs,
        out_specs=pl.BlockSpec((Bblk, Hout, W * Cout_last), lambda g: (g, 0, 0)),
        scratch_shapes=[pltpu.VMEM((Bblk, Hp, Kpad), jnp.float32)],
        compiler_params=pltpu.CompilerParams(
            dimension_semantics=("parallel",)),
    )(*inputs)

    # (N_pad, Hout, W*Cout) -> NCHW (tiny).
    out = out[:N].reshape(N, Hout, W, Cout_last)
    return jnp.transpose(out, (0, 3, 1, 2))


# ----------------------------------------------------------------------------
# Pure-JAX reference (for a loose correctness sanity check)
# ----------------------------------------------------------------------------
def _reference_forward(x_nchw, params, pooling_size, activation):
    x = x_nchw.astype(jnp.float32)
    L = len(params)
    for idx, (w, b) in enumerate(params):
        KH, KW = w.shape[0], w.shape[1]
        pad = (((KH - 1) // 2, (KH - 1) - (KH - 1) // 2),
               ((KW - 1) // 2, (KW - 1) - (KW - 1) // 2))
        w_oihw = jnp.transpose(w, (3, 2, 0, 1))
        x = jax.lax.conv_general_dilated(
            x, w_oihw, (1, 1), pad,
            dimension_numbers=("NCHW", "OIHW", "NCHW"),
            precision=jax.lax.Precision.HIGHEST)
        x = x + b.reshape(1, -1, 1, 1)
        if idx < L - 1:
            x = jnp.maximum(x, 0.0) if activation == "relu" else jax.nn.sigmoid(x)
    N, C, H, W = x.shape
    Hout = H // pooling_size
    return x[:, :, :Hout * pooling_size, :].reshape(
        N, C, Hout, pooling_size, W).max(axis=3)


# ----------------------------------------------------------------------------
if __name__ == "__main__":
    # Module hyper-parameters (small, consistent with the PyTorch __init__).
    in_channels = 4
    out_channels = 8
    kernel_size = 3
    pooling_size = 2
    middle_layer_filter = 8
    depth = 2
    activation = "relu"

    key = jax.random.PRNGKey(0)
    k_x, k_p = jax.random.split(key)

    # Input in PyTorch NCHW layout.
    x = jax.random.normal(k_x, (2, in_channels, 16, 16), jnp.float32)

    params = init_uencoder_params(k_p, in_channels, out_channels, kernel_size,
                                  middle_layer_filter, depth)
    # One-time parameter preparation (hoisted out of the jitted forward).
    prepped = prepare_uencoder_params(params, W=x.shape[3])

    out = uencoder_forward(x, prepped, pooling_size, activation)
    out = jax.block_until_ready(out)

    expected_shape = (2, out_channels, 16 // pooling_size, 16)
    assert out.shape == expected_shape, (out.shape, expected_shape)
    assert out.dtype == jnp.float32

    # Loose sanity check vs. a pure-JAX HIGHEST-precision reference.  The
    # tolerance covers the documented choice of bf16 MXU operands (weights +
    # activation casts) with f32 accumulation; real bugs are O(0.5).
    ref = _reference_forward(x, params, pooling_size, activation)
    max_err = float(jnp.max(jnp.abs(out - ref)))
    assert max_err < 5e-2, f"mismatch vs reference: max_err={max_err}"

    print("KERNEL_OK")
</pallas_src>

<mosaic_0001>
module attributes {stable_mosaic.version = 11 : i64} {
  func.func @_uencoder_fused_kernel(%arg0: i32, %arg1: memref<2x16x128xf32, #tpu.memory_space<vmem>>, %arg2: memref<3x72x128xbf16, #tpu.memory_space<vmem>>, %arg3: memref<1x128xf32, #tpu.memory_space<vmem>>, %arg4: memref<3x144x128xbf16, #tpu.memory_space<vmem>>, %arg5: memref<1x128xf32, #tpu.memory_space<vmem>>, %arg6: memref<3x144x128xbf16, #tpu.memory_space<vmem>>, %arg7: memref<1x128xf32, #tpu.memory_space<vmem>>, %arg8: memref<2x8x128xf32, #tpu.memory_space<vmem>>, %arg9: memref<2x18x144xf32, #tpu.memory_space<vmem>>) attributes {dimension_semantics = [#tpu.dimension_semantics<parallel>], iteration_bounds = array<i64: 1>, scalar_prefetch = 0 : i64, scratch_operands = 1 : i64, tpu.core_type = #tpu.core_type<tc>, window_params = [{transform_indices = @transform_0, window_bounds = array<i64: 2, 16, 128>}, {pipeline_mode = #tpu.pipeline_mode<synchronous>, transform_indices = @transform_1, window_bounds = array<i64: 3, 72, 128>}, {pipeline_mode = #tpu.pipeline_mode<synchronous>, transform_indices = @transform_2, window_bounds = array<i64: 1, 128>}, {pipeline_mode = #tpu.pipeline_mode<synchronous>, transform_indices = @transform_3, window_bounds = array<i64: 3, 144, 128>}, {pipeline_mode = #tpu.pipeline_mode<synchronous>, transform_indices = @transform_4, window_bounds = array<i64: 1, 128>}, {pipeline_mode = #tpu.pipeline_mode<synchronous>, transform_indices = @transform_5, window_bounds = array<i64: 3, 144, 128>}, {pipeline_mode = #tpu.pipeline_mode<synchronous>, transform_indices = @transform_6, window_bounds = array<i64: 1, 128>}, {transform_indices = @transform_7, window_bounds = array<i64: 2, 8, 128>}]} {
    %cst = arith.constant 0.000000e+00 : f32
    %0 = vector.broadcast %cst : f32 to vector<2x18x144xf32>
    %c0 = arith.constant 0 : index
    %c0_0 = arith.constant 0 : index
    %c0_1 = arith.constant 0 : index
    %1 = vector.load %arg9[%c0, %c0_0, %c0_1] : memref<2x18x144xf32, #tpu.memory_space<vmem>>, vector<2x18x144xf32>
    tpu.vector_store %arg9[%c0, %c0_0, %c0_1], %0 {strides = array<i32>} : memref<2x18x144xf32, #tpu.memory_space<vmem>>, vector<2x18x144xf32>,
    %c0_2 = arith.constant 0 : index
    %c0_3 = arith.constant 0 : index
    %c0_4 = arith.constant 0 : index
    %2 = vector.load %arg1[%c0_2, %c0_3, %c0_4] : memref<2x16x128xf32, #tpu.memory_space<vmem>>, vector<2x16x128xf32>
    %c0_5 = arith.constant 0 : index
    %c1 = arith.constant 1 : index
    %c0_6 = arith.constant 0 : index
    %3 = vector.load %arg9[%c0_5, %c1, %c0_6] : memref<2x18x144xf32, #tpu.memory_space<vmem>>, vector<2x16x128xf32>
    tpu.vector_store %arg9[%c0_5, %c1, %c0_6], %2 {strides = array<i32>} : memref<2x18x144xf32, #tpu.memory_space<vmem>>, vector<2x16x128xf32>,
    %c0_7 = arith.constant 0 : index
    %c0_8 = arith.constant 0 : index
    %c0_9 = arith.constant 0 : index
    %4 = vector.load %arg9[%c0_7, %c0_8, %c0_9] : memref<2x18x144xf32, #tpu.memory_space<vmem>>, vector<2x16x72xf32>
    %5 = vector.shape_cast %4 : vector<2x16x72xf32> to vector<32x72xf32>
    %6 = arith.truncf %5 : vector<32x72xf32> to vector<32x72xbf16>
    %c0_10 = arith.constant 0 : index
    %c0_11 = arith.constant 0 : index
    %c0_12 = arith.constant 0 : index
    %7 = vector.load %arg2[%c0_10, %c0_11, %c0_12] : memref<3x72x128xbf16, #tpu.memory_space<vmem>>, vector<1x72x128xbf16>
    %8 = vector.shape_cast %7 : vector<1x72x128xbf16> to vector<72x128xbf16>
    %cst_13 = arith.constant dense<0.000000e+00> : vector<32x128xf32>
    %9 = tpu.matmul %6, %8, %cst_13 {dimension_numbers = #tpu.dot_dimension_numbers<[1], [0], [0], [1], [0, 0, 1, 1], [], []>} : vector<32x72xbf16>, vector<72x128xbf16>, vector<32x128xf32> -> vector<32x128xf32>
    %c0_14 = arith.constant 0 : index
    %c1_15 = arith.constant 1 : index
    %c0_16 = arith.constant 0 : index
    %10 = vector.load %arg9[%c0_14, %c1_15, %c0_16] : memref<2x18x144xf32, #tpu.memory_space<vmem>>, vector<2x16x72xf32>
    %11 = vector.shape_cast %10 : vector<2x16x72xf32> to vector<32x72xf32>
    %12 = arith.truncf %11 : vector<32x72xf32> to vector<32x72xbf16>
    %c1_17 = arith.constant 1 : index
    %c0_18 = arith.constant 0 : index
    %c0_19 = arith.constant 0 : index
    %13 = vector.load %arg2[%c1_17, %c0_18, %c0_19] : memref<3x72x128xbf16, #tpu.memory_space<vmem>>, vector<1x72x128xbf16>
    %14 = vector.shape_cast %13 : vector<1x72x128xbf16> to vector<72x128xbf16>
    %cst_20 = arith.constant dense<0.000000e+00> : vector<32x128xf32>
    %15 = tpu.matmul %12, %14, %cst_20 {dimension_numbers = #tpu.dot_dimension_numbers<[1], [0], [0], [1], [0, 0, 1, 1], [], []>} : vector<32x72xbf16>, vector<72x128xbf16>, vector<32x128xf32> -> vector<32x128xf32>
    %16 = arith.addf %9, %15 : vector<32x128xf32>
    %c0_21 = arith.constant 0 : index
    %c2 = arith.constant 2 : index
    %c0_22 = arith.constant 0 : index
    %17 = vector.load %arg9[%c0_21, %c2, %c0_22] : memref<2x18x144xf32, #tpu.memory_space<vmem>>, vector<2x16x72xf32>
    %18 = vector.shape_cast %17 : vector<2x16x72xf32> to vector<32x72xf32>
    %19 = arith.truncf %18 : vector<32x72xf32> to vector<32x72xbf16>
    %c2_23 = arith.constant 2 : index
    %c0_24 = arith.constant 0 : index
    %c0_25 = arith.constant 0 : index
    %20 = vector.load %arg2[%c2_23, %c0_24, %c0_25] : memref<3x72x128xbf16, #tpu.memory_space<vmem>>, vector<1x72x128xbf16>
    %21 = vector.shape_cast %20 : vector<1x72x128xbf16> to vector<72x128xbf16>
    %cst_26 = arith.constant dense<0.000000e+00> : vector<32x128xf32>
    %22 = tpu.matmul %19, %21, %cst_26 {dimension_numbers = #tpu.dot_dimension_numbers<[1], [0], [0], [1], [0, 0, 1, 1], [], []>} : vector<32x72xbf16>, vector<72x128xbf16>, vector<32x128xf32> -> vector<32x128xf32>
    %23 = arith.addf %16, %22 : vector<32x128xf32>
    %c0_27 = arith.constant 0 : index
    %c0_28 = arith.constant 0 : index
    %24 = vector.load %arg3[%c0_27, %c0_28] : memref<1x128xf32, #tpu.memory_space<vmem>>, vector<1x128xf32>
    %25 = vector.broadcast %24 : vector<1x128xf32> to vector<32x128xf32>
    %26 = arith.addf %23, %25 : vector<32x128xf32>
    %cst_29 = arith.constant 0.000000e+00 : f32
    %27 = vector.broadcast %cst_29 : f32 to vector<32x128xf32>
    %28 = arith.maximumf %26, %27 : vector<32x128xf32>
    %29 = vector.shape_cast %28 : vector<32x128xf32> to vector<2x16x128xf32>
    %c0_30 = arith.constant 0 : index
    %c1_31 = arith.constant 1 : index
    %c0_32 = arith.constant 0 : index
    %30 = vector.load %arg9[%c0_30, %c1_31, %c0_32] : memref<2x18x144xf32, #tpu.memory_space<vmem>>, vector<2x16x128xf32>
    tpu.vector_store %arg9[%c0_30, %c1_31, %c0_32], %29 {strides = array<i32>} : memref<2x18x144xf32, #tpu.memory_space<vmem>>, vector<2x16x128xf32>,
    %c0_33 = arith.constant 0 : index
    %c0_34 = arith.constant 0 : index
    %c0_35 = arith.constant 0 : index
    %31 = vector.load %arg9[%c0_33, %c0_34, %c0_35] : memref<2x18x144xf32, #tpu.memory_space<vmem>>, vector<2x16x144xf32>
    %32 = vector.shape_cast %31 : vector<2x16x144xf32> to vector<32x144xf32>
    %33 = arith.truncf %32 : vector<32x144xf32> to vector<32x144xbf16>
    %c0_36 = arith.constant 0 : index
    %c0_37 = arith.constant 0 : index
    %c0_38 = arith.constant 0 : index
    %34 = vector.load %arg4[%c0_36, %c0_37, %c0_38] : memref<3x144x128xbf16, #tpu.memory_space<vmem>>, vector<1x144x128xbf16>
    %35 = vector.shape_cast %34 : vector<1x144x128xbf16> to vector<144x128xbf16>
    %cst_39 = arith.constant dense<0.000000e+00> : vector<32x128xf32>
    %36 = tpu.matmul %33, %35, %cst_39 {dimension_numbers = #tpu.dot_dimension_numbers<[1], [0], [0], [1], [0, 0, 1, 1], [], []>} : vector<32x144xbf16>, vector<144x128xbf16>, vector<32x128xf32> -> vector<32x128xf32>
    %c0_40 = arith.constant 0 : index
    %c1_41 = arith.constant 1 : index
    %c0_42 = arith.constant 0 : index
    %37 = vector.load %arg9[%c0_40, %c1_41, %c0_42] : memref<2x18x144xf32, #tpu.memory_space<vmem>>, vector<2x16x144xf32>
    %38 = vector.shape_cast %37 : vector<2x16x144xf32> to vector<32x144xf32>
    %39 = arith.truncf %38 : vector<32x144xf32> to vector<32x144xbf16>
    %c1_43 = arith.constant 1 : index
    %c0_44 = arith.constant 0 : index
    %c0_45 = arith.constant 0 : index
    %40 = vector.load %arg4[%c1_43, %c0_44, %c0_45] : memref<3x144x128xbf16, #tpu.memory_space<vmem>>, vector<1x144x128xbf16>
    %41 = vector.shape_cast %40 : vector<1x144x128xbf16> to vector<144x128xbf16>
    %cst_46 = arith.constant dense<0.000000e+00> : vector<32x128xf32>
    %42 = tpu.matmul %39, %41, %cst_46 {dimension_numbers = #tpu.dot_dimension_numbers<[1], [0], [0], [1], [0, 0, 1, 1], [], []>} : vector<32x144xbf16>, vector<144x128xbf16>, vector<32x128xf32> -> vector<32x128xf32>
    %43 = arith.addf %36, %42 : vector<32x128xf32>
    %c0_47 = arith.constant 0 : index
    %c2_48 = arith.constant 2 : index
    %c0_49 = arith.constant 0 : index
    %44 = vector.load %arg9[%c0_47, %c2_48, %c0_49] : memref<2x18x144xf32, #tpu.memory_space<vmem>>, vector<2x16x144xf32>
    %45 = vector.shape_cast %44 : vector<2x16x144xf32> to vector<32x144xf32>
    %46 = arith.truncf %45 : vector<32x144xf32> to vector<32x144xbf16>
    %c2_50 = arith.constant 2 : index
    %c0_51 = arith.constant 0 : index
    %c0_52 = arith.constant 0 : index
    %47 = vector.load %arg4[%c2_50, %c0_51, %c0_52] : memref<3x144x128xbf16, #tpu.memory_space<vmem>>, vector<1x144x128xbf16>
    %48 = vector.shape_cast %47 : vector<1x144x128xbf16> to vector<144x128xbf16>
    %cst_53 = arith.constant dense<0.000000e+00> : vector<32x128xf32>
    %49 = tpu.matmul %46, %48, %cst_53 {dimension_numbers = #tpu.dot_dimension_numbers<[1], [0], [0], [1], [0, 0, 1, 1], [], []>} : vector<32x144xbf16>, vector<144x128xbf16>, vector<32x128xf32> -> vector<32x128xf32>
    %50 = arith.addf %43, %49 : vector<32x128xf32>
    %c0_54 = arith.constant 0 : index
    %c0_55 = arith.constant 0 : index
    %51 = vector.load %arg5[%c0_54, %c0_55] : memref<1x128xf32, #tpu.memory_space<vmem>>, vector<1x128xf32>
    %52 = vector.broadcast %51 : vector<1x128xf32> to vector<32x128xf32>
    %53 = arith.addf %50, %52 : vector<32x128xf32>
    %cst_56 = arith.constant 0.000000e+00 : f32
    %54 = vector.broadcast %cst_56 : f32 to vector<32x128xf32>
    %55 = arith.maximumf %53, %54 : vector<32x128xf32>
    %56 = vector.shape_cast %55 : vector<32x128xf32> to vector<2x16x128xf32>
    %c0_57 = arith.constant 0 : index
    %c1_58 = arith.constant 1 : index
    %c0_59 = arith.constant 0 : index
    %57 = vector.load %arg9[%c0_57, %c1_58, %c0_59] : memref<2x18x144xf32, #tpu.memory_space<vmem>>, vector<2x16x128xf32>
    tpu.vector_store %arg9[%c0_57, %c1_58, %c0_59], %56 {strides = array<i32>} : memref<2x18x144xf32, #tpu.memory_space<vmem>>, vector<2x16x128xf32>,
    %c0_60 = arith.constant 0 : index
    %c0_61 = arith.constant 0 : index
    %c0_62 = arith.constant 0 : index
    %58 = vector.load %arg9[%c0_60, %c0_61, %c0_62] : memref<2x18x144xf32, #tpu.memory_space<vmem>>, vector<2x16x144xf32>
    %59 = vector.shape_cast %58 : vector<2x16x144xf32> to vector<32x144xf32>
    %60 = arith.truncf %59 : vector<32x144xf32> to vector<32x144xbf16>
    %c0_63 = arith.constant 0 : index
    %c0_64 = arith.constant 0 : index
    %c0_65 = arith.constant 0 : index
    %61 = vector.load %arg6[%c0_63, %c0_64, %c0_65] : memref<3x144x128xbf16, #tpu.memory_space<vmem>>, vector<1x144x128xbf16>
    %62 = vector.shape_cast %61 : vector<1x144x128xbf16> to vector<144x128xbf16>
    %cst_66 = arith.constant dense<0.000000e+00> : vector<32x128xf32>
    %63 = tpu.matmul %60, %62, %cst_66 {dimension_numbers = #tpu.dot_dimension_numbers<[1], [0], [0], [1], [0, 0, 1, 1], [], []>} : vector<32x144xbf16>, vector<144x128xbf16>, vector<32x128xf32> -> vector<32x128xf32>
    %c0_67 = arith.constant 0 : index
    %c1_68 = arith.constant 1 : index
    %c0_69 = arith.constant 0 : index
    %64 = vector.load %arg9[%c0_67, %c1_68, %c0_69] : memref<2x18x144xf32, #tpu.memory_space<vmem>>, vector<2x16x144xf32>
    %65 = vector.shape_cast %64 : vector<2x16x144xf32> to vector<32x144xf32>
    %66 = arith.truncf %65 : vector<32x144xf32> to vector<32x144xbf16>
    %c1_70 = arith.constant 1 : index
    %c0_71 = arith.constant 0 : index
    %c0_72 = arith.constant 0 : index
    %67 = vector.load %arg6[%c1_70, %c0_71, %c0_72] : memref<3x144x128xbf16, #tpu.memory_space<vmem>>, vector<1x144x128xbf16>
    %68 = vector.shape_cast %67 : vector<1x144x128xbf16> to vector<144x128xbf16>
    %cst_73 = arith.constant dense<0.000000e+00> : vector<32x128xf32>
    %69 = tpu.matmul %66, %68, %cst_73 {dimension_numbers = #tpu.dot_dimension_numbers<[1], [0], [0], [1], [0, 0, 1, 1], [], []>} : vector<32x144xbf16>, vector<144x128xbf16>, vector<32x128xf32> -> vector<32x128xf32>
    %70 = arith.addf %63, %69 : vector<32x128xf32>
    %c0_74 = arith.constant 0 : index
    %c2_75 = arith.constant 2 : index
    %c0_76 = arith.constant 0 : index
    %71 = vector.load %arg9[%c0_74, %c2_75, %c0_76] : memref<2x18x144xf32, #tpu.memory_space<vmem>>, vector<2x16x144xf32>
    %72 = vector.shape_cast %71 : vector<2x16x144xf32> to vector<32x144xf32>
    %73 = arith.truncf %72 : vector<32x144xf32> to vector<32x144xbf16>
    %c2_77 = arith.constant 2 : index
    %c0_78 = arith.constant 0 : index
    %c0_79 = arith.constant 0 : index
    %74 = vector.load %arg6[%c2_77, %c0_78, %c0_79] : memref<3x144x128xbf16, #tpu.memory_space<vmem>>, vector<1x144x128xbf16>
    %75 = vector.shape_cast %74 : vector<1x144x128xbf16> to vector<144x128xbf16>
    %cst_80 = arith.constant dense<0.000000e+00> : vector<32x128xf32>
    %76 = tpu.matmul %73, %75, %cst_80 {dimension_numbers = #tpu.dot_dimension_numbers<[1], [0], [0], [1], [0, 0, 1, 1], [], []>} : vector<32x144xbf16>, vector<144x128xbf16>, vector<32x128xf32> -> vector<32x128xf32>
    %77 = arith.addf %70, %76 : vector<32x128xf32>
    %c0_81 = arith.constant 0 : index
    %c0_82 = arith.constant 0 : index
    %78 = vector.load %arg7[%c0_81, %c0_82] : memref<1x128xf32, #tpu.memory_space<vmem>>, vector<1x128xf32>
    %79 = vector.broadcast %78 : vector<1x128xf32> to vector<32x128xf32>
    %80 = arith.addf %77, %79 : vector<32x128xf32>
    %81 = vector.shape_cast %80 : vector<32x128xf32> to vector<2x16x128xf32>
    %82 = vector.shape_cast %81 : vector<2x16x128xf32> to vector<2x8x2x128xf32>
    %cst_83 = arith.constant dense<0xFF800000> : vector<2x8x128xf32>
    %83 = vector.multi_reduction <maximumf>, %82, %cst_83 [2] : vector<2x8x2x128xf32> to vector<2x8x128xf32>
    %c0_84 = arith.constant 0 : index
    %c0_85 = arith.constant 0 : index
    %c0_86 = arith.constant 0 : index
    %84 = vector.load %arg8[%c0_84, %c0_85, %c0_86] : memref<2x8x128xf32, #tpu.memory_space<vmem>>, vector<2x8x128xf32>
    tpu.vector_store %arg8[%c0_84, %c0_85, %c0_86], %83 {strides = array<i32>} : memref<2x8x128xf32, #tpu.memory_space<vmem>>, vector<2x8x128xf32>,
    return
  }
  func.func @transform_0(%arg0: i32) -> (i32, i32, i32) {
    %c0_i32 = arith.constant 0 : i32
    %c0_i32_0 = arith.constant 0 : i32
    %c0_i32_1 = arith.constant 0 : i32
    return %arg0, %c0_i32, %c0_i32_0 : i32, i32, i32
  }
  func.func @transform_1(%arg0: i32) -> (i32, i32, i32) {
    %c0_i32 = arith.constant 0 : i32
    %c0_i32_0 = arith.constant 0 : i32
    %c0_i32_1 = arith.constant 0 : i32
    %c0_i32_2 = arith.constant 0 : i32
    return %c0_i32, %c0_i32_0, %c0_i32_1 : i32, i32, i32
  }
  func.func @transform_2(%arg0: i32) -> (i32, i32) {
    %c0_i32 = arith.constant 0 : i32
    %c0_i32_0 = arith.constant 0 : i32
    %c0_i32_1 = arith.constant 0 : i32
    return %c0_i32, %c0_i32_0 : i32, i32
  }
  func.func @transform_3(%arg0: i32) -> (i32, i32, i32) {
    %c0_i32 = arith.constant 0 : i32
    %c0_i32_0 = arith.constant 0 : i32
    %c0_i32_1 = arith.constant 0 : i32
    %c0_i32_2 = arith.constant 0 : i32
    return %c0_i32, %c0_i32_0, %c0_i32_1 : i32, i32, i32
  }
  func.func @transform_4(%arg0: i32) -> (i32, i32) {
    %c0_i32 = arith.constant 0 : i32
    %c0_i32_0 = arith.constant 0 : i32
    %c0_i32_1 = arith.constant 0 : i32
    return %c0_i32, %c0_i32_0 : i32, i32
  }
  func.func @transform_5(%arg0: i32) -> (i32, i32, i32) {
    %c0_i32 = arith.constant 0 : i32
    %c0_i32_0 = arith.constant 0 : i32
    %c0_i32_1 = arith.constant 0 : i32
    %c0_i32_2 = arith.constant 0 : i32
    return %c0_i32, %c0_i32_0, %c0_i32_1 : i32, i32, i32
  }
  func.func @transform_6(%arg0: i32) -> (i32, i32) {
    %c0_i32 = arith.constant 0 : i32
    %c0_i32_0 = arith.constant 0 : i32
    %c0_i32_1 = arith.constant 0 : i32
    return %c0_i32, %c0_i32_0 : i32, i32
  }
  func.func @transform_7(%arg0: i32) -> (i32, i32, i32) {
    %c0_i32 = arith.constant 0 : i32
    %c0_i32_0 = arith.constant 0 : i32
    %c0_i32_1 = arith.constant 0 : i32
    return %arg0, %c0_i32, %c0_i32_0 : i32, i32, i32
  }
}

</mosaic_0001>

<llo_original>
// kernel: uencoder_forward.1
$region0: #{uencoder_forward.1}
  #allocation0 [shape = 'u32[]', space=smem, size = 0x4, offset = 0x4, fixed_abs, tag = 'smem constant byte address 0x4 - core index']
  #allocation1 [shape = 'u32[144,128]{1,0:T(1,128)}', space=vmem, size = 0x12000, scoped, tag = 'internal scratch']
  #allocation2 [shape = 'f32[2,18,144]{2,1,0:T(8,128)}', space=vmem, size = 0xc000, scoped, tag = 'scratch operand']
  %s0 = inlined_call_operand.vmem [shape: f32[2,16,128], index: 0, kind: input, shape index: {}]
  %s1 = inlined_call_operand.hbm [shape: bf16[3,72,128], index: 1, kind: input, shape index: {}]
  %s2 = inlined_call_operand.vmem [shape: f32[1,128], index: 2, kind: input, shape index: {}]
  %s3 = inlined_call_operand.vmem [shape: bf16[3,144,128], index: 3, kind: input, shape index: {}]
  %s4 = inlined_call_operand.vmem [shape: f32[1,128], index: 4, kind: input, shape index: {}]
  %s5 = inlined_call_operand.vmem [shape: bf16[3,144,128], index: 5, kind: input, shape index: {}]
  %s6 = inlined_call_operand.vmem [shape: f32[1,128], index: 6, kind: input, shape index: {}]
  %s7 = inlined_call_operand.vmem [shape: f32[2,8,128], index: 7, kind: output, shape index: {}]
  %s8 = sld [smem:[#allocation0]]
  $region42: #{uencoder_forward.1} parent=0
    _
  %s10 = ssub.s32 1, %s8
  %s11 = scalar_select 0, %s10, %s8
  $region1: #{uencoder_forward.1} parent=0
    #allocation3 [shape = 'u8[55296]{0}', space=vmem, size = 0xd800, scoped, tag = 'input window, operand 1, single buffered']
    #allocation4 [shape = 's32[1]{0}', space=sflag, size = 0x4, scoped, tag = 'scoped memory for uencoder_forward.1']
    %12 = vsyncpa [#allocation4], 0
    // Predicated region
    $region2: #{uencoder_forward.1} parent=1 // pred_check
      _
    $region3: #{uencoder_forward.1} parent=1 // pred_check_branch
      %14 = sbr.rel (0) target = $region5
    $region4: #{uencoder_forward.1} parent=1 // pred_region
      _
    $region5: #{uencoder_forward.1} parent=1 // pred_fallthru
      _
    // Predicated region
    $region6: #{uencoder_forward.1} parent=1 // pred_check
      _
    $region7: #{uencoder_forward.1} parent=1 // pred_check_branch
      %16 = sbr.rel (0) target = $region9
    $region8: #{uencoder_forward.1} parent=1 // pred_region
      %s18 = ssub.s32 1728, 1728
      %19 = vsyncadd [#allocation4], %s18
      %s20 = sshll.u32 [#allocation3], 4
      %s21 = int_to_ptr.vmem [resolvable:$true] %s20
      %26 = dma.hbm_to_vmem [thread:$0]  %s1, 1728, %s21, [#allocation4], 64, 64, 4
    $region9: #{uencoder_forward.1} parent=1 // pred_fallthru
      _
    // Predicated region
    $region10: #{uencoder_forward.1} parent=1 // pred_check
      _
    $region11: #{uencoder_forward.1} parent=1 // pred_check_branch
      %28 = sbr.rel (0) target = $region13
    $region12: #{uencoder_forward.1} parent=1 // pred_region
      _
    $region13: #{uencoder_forward.1} parent=1 // pred_fallthru
      _
    // Predicated region
    $region14: #{uencoder_forward.1} parent=1 // pred_check
      _
    $region15: #{uencoder_forward.1} parent=1 // pred_check_branch
      %30 = sbr.rel (0) target = $region17
    $region16: #{uencoder_forward.1} parent=1 // pred_region
      _
    $region17: #{uencoder_forward.1} parent=1 // pred_fallthru
      _
    // Predicated region
    $region18: #{uencoder_forward.1} parent=1 // pred_check
      _
    $region19: #{uencoder_forward.1} parent=1 // pred_check_branch
      %32 = sbr.rel (0) target = $region21
    $region20: #{uencoder_forward.1} parent=1 // pred_region
      _
    $region21: #{uencoder_forward.1} parent=1 // pred_fallthru
      _
    // Predicated region
    $region22: #{uencoder_forward.1} parent=1 // pred_check
      _
    $region23: #{uencoder_forward.1} parent=1 // pred_check_branch
      %34 = sbr.rel (0) target = $region25
    $region24: #{uencoder_forward.1} parent=1 // pred_region
      _
    $region25: #{uencoder_forward.1} parent=1 // pred_fallthru
      _
    // Predicated region
    $region26: #{uencoder_forward.1} parent=1 // pred_check
      _
    $region27: #{uencoder_forward.1} parent=1 // pred_check_branch
      %36 = sbr.rel (0) target = $region29
    $region28: #{uencoder_forward.1} parent=1 // pred_region
      _
    $region29: #{uencoder_forward.1} parent=1 // pred_fallthru
      _
    // Predicated region
    $region30: #{uencoder_forward.1} parent=1 // pred_check
      _
    $region31: #{uencoder_forward.1} parent=1 // pred_check_branch
      %38 = sbr.rel (0) target = $region33
    $region32: #{uencoder_forward.1} parent=1 // pred_region
      %39 = dma.done [#allocation4], 1728
    $region33: #{uencoder_forward.1} parent=1 // pred_fallthru
      _
    %41 = vst [vmem:[#allocation2] sm:$0xff] 0.0
    %vm42 = vcmask 130048
    %43 = vst.msk [vmem:[#allocation2 + $0x8] sm:$0xff] %vm42, 0.0
    %44 = vst [vmem:[#allocation2 + $0x10] sm:$0xff] 0.0
    %45 = vst.msk [vmem:[#allocation2 + $0x18] sm:$0xff] %vm42, 0.0
    %46 = vst [vmem:[#allocation2 + $0x20] sm:$0x3] 0.0
    %vm47 = vcmask 123904
    %48 = vst.msk [vmem:[#allocation2 + $0x28] sm:$0x3] %vm47, 0.0
    %49 = vst [vmem:[#allocation2 + $0x30] sm:$0xff] 0.0
    %50 = vst.msk [vmem:[#allocation2 + $0x38] sm:$0xff] %vm42, 0.0
    %51 = vst [vmem:[#allocation2 + $0x40] sm:$0xff] 0.0
    %52 = vst.msk [vmem:[#allocation2 + $0x48] sm:$0xff] %vm42, 0.0
    %53 = vst [vmem:[#allocation2 + $0x50] sm:$0x3] 0.0
    %54 = vst.msk [vmem:[#allocation2 + $0x58] sm:$0x3] %vm47, 0.0
    %v55 = vld [vmem:[%s0] sm:$0xff]
    %v56 = vld [vmem:[%s0 + $0x8] sm:$0xff]
    %v57 = vld [vmem:[%s0 + $0x10] sm:$0xff]
    %v58 = vld [vmem:[%s0 + $0x18] sm:$0xff]
    %vm63 = vcmask 1040384
    %v64 = vrot.slane %v55, 7
    %v65 = vrot.slane %v56, 7
    %v66 = vsel %vm63, %v64, %v65
    %v67 = vrot.slane %v57, 7
    %v68 = vrot.slane %v58, 7
    %v69 = vsel %vm63, %v67, %v68
    %76 = vst [vmem:[#allocation2] sm:$0xfe] %v64
    %77 = vst [vmem:[#allocation2 + $0x10] sm:$0xff] %v66
    %78 = vst [vmem:[#allocation2 + $0x20] sm:$0x1] %v65
    %79 = vst [vmem:[#allocation2 + $0x30] sm:$0xfe] %v67
    %80 = vst [vmem:[#allocation2 + $0x40] sm:$0xff] %v69
    %81 = vst [vmem:[#allocation2 + $0x50] sm:$0x1] %v68
    %v82 = vld [vmem:[#allocation2] sm:$0xff]
    %v83 = vld [vmem:[#allocation2 + $0x10] sm:$0xff]
    %v84 = vld [vmem:[#allocation2 + $0x30] sm:$0xff]
    %v85 = vld [vmem:[#allocation2 + $0x40] sm:$0xff]
    %v86 = vpack.c.bf16 %v83, %v82
    %v87 = vpack.c.bf16 %v85, %v84
    %v88 = vld [vmem:[#allocation3] sm:$0xf]
    %v89 = vld [vmem:[#allocation3 + $0x4] sm:$0xf]
    %v90 = vld [vmem:[#allocation3 + $0x8] sm:$0xf]
    %v91 = vld [vmem:[#allocation3 + $0xc] sm:$0xf]
    %v92 = vld [vmem:[#allocation3 + $0x10] sm:$0xf]
    %v93 = vld [vmem:[#allocation3 + $0x14] sm:$0xf]
    %v94 = vld [vmem:[#allocation3 + $0x18] sm:$0xf]
    %v95 = vld [vmem:[#allocation3 + $0x1c] sm:$0xf]
    %v96 = vld [vmem:[#allocation3 + $0x20] sm:$0xf]
    %v97 = vld [vmem:[#allocation2] sm:$0xfe]
    %v98 = vld [vmem:[#allocation2 + $0x20] sm:$0x1]
    %v99 = vld [vmem:[#allocation2 + $0x30] sm:$0xfe]
    %v100 = vld [vmem:[#allocation2 + $0x50] sm:$0x1]
    %vm107 = vcmask 1046528
    %v108 = vrot.slane %v97, 1
    %v109 = vrot.slane %v83, 1
    %v110 = vsel %vm107, %v108, %v109
    %v111 = vrot.slane %v98, 1
    %v112 = vsel %vm107, %v109, %v111
    %v113 = vrot.slane %v99, 1
    %v114 = vrot.slane %v85, 1
    %v115 = vsel %vm107, %v113, %v114
    %v116 = vrot.slane %v100, 1
    %v117 = vsel %vm107, %v114, %v116
    %v122 = vpack.c.bf16 %v112, %v110
    %v123 = vpack.c.bf16 %v117, %v115
    %s124 = scalar_lea.vmem [#allocation3], 36
    %v125 = vld [vmem:[%s124] sm:$0xf]
    %v126 = vld [vmem:[%s124 + $0x4] sm:$0xf]
    %v127 = vld [vmem:[%s124 + $0x8] sm:$0xf]
    %v128 = vld [vmem:[%s124 + $0xc] sm:$0xf]
    %v129 = vld [vmem:[%s124 + $0x10] sm:$0xf]
    %v130 = vld [vmem:[%s124 + $0x14] sm:$0xf]
    %v131 = vld [vmem:[%s124 + $0x18] sm:$0xf]
    %v132 = vld [vmem:[%s124 + $0x1c] sm:$0xf]
    %v133 = vld [vmem:[%s124 + $0x20] sm:$0xf]
    %v143 = vunpack.c.l.b16 %v125
    %v144 = vunpack.c.l.b16 %v126
    %v145 = vunpack.c.l.b16 %v127
    %v146 = vunpack.c.l.b16 %v128
    %v147 = vunpack.c.l.b16 %v129
    %v148 = vunpack.c.l.b16 %v130
    %v149 = vunpack.c.l.b16 %v131
    %v150 = vunpack.c.l.b16 %v132
    %v151 = vunpack.c.l.b16 %v133
    %v152 = vpack.c.b16 %v144, %v143
    %v153 = vpack.c.b16 %v146, %v145
    %v154 = vpack.c.b16 %v148, %v147
    %v155 = vpack.c.b16 %v150, %v149
    %v156 = vpack.c.b16 %v151, %v151
    %vm161 = vcmask 588800
    %v163 = vsel %vm161, %v122, 0
    %v166 = vsel %vm161, %v123, 0
    %vm168 = vcmask 1043456
    %v170 = vsel %vm168, %v156, 0
    %172 = vmatprep.subr.bf16.mxu0 0
    %173 = vmatpush1.bf16.msra.mxu0 0
    %174 = vmatprep.subr.bf16.mxu0 0
    %175 = vmatpush1.bf16.msra.mxu0 0
    %176 = vmatprep.subr.bf16.mxu0 0
    %177 = vmatpush1.bf16.msra.mxu0 0
    %178 = vmatprep.subr.bf16.mxu0 0
    %179 = vmatpush1.bf16.msra.mxu0 %v170
    %180 = vmatprep.subr.bf16.mxu0 0
    %181 = vmatpush1.bf16.msra.mxu0 %v155
    %182 = vmatprep.subr.bf16.mxu0 0
    %183 = vmatpush1.bf16.msra.mxu0 %v154
    %184 = vmatprep.subr.bf16.mxu0 0
    %185 = vmatpush1.bf16.msra.mxu0 %v153
    %186 = vmatprep.subr.bf16.mxu0 0
    %187 = vmatpush1.bf16.msra.mxu0 %v152
    %188 = vmatprep.subr.bf16.mxu0 0
    %189 = vmatpush2.bf16.msra.mxu0 0
    %190 = vmatprep.subr.bf16.mxu0 0
    %191 = vmatpush2.bf16.msra.mxu0 0
    %192 = vmatprep.subr.bf16.mxu0 0
    %193 = vmatpush2.bf16.msra.mxu0 0
    %194 = vmatprep.subr.bf16.mxu0 0
    %195 = vmatpush2.bf16.msra.mxu0 0
    %196 = vmatprep.subr.bf16.mxu0 0
    %197 = vmatpush2.bf16.msra.mxu0 0
    %198 = vmatprep.subr.bf16.mxu0 0
    %199 = vmatpush2.bf16.msra.mxu0 0
    %200 = vmatprep.subr.bf16.mxu0 0
    %201 = vmatpush2.bf16.msra.mxu0 0
    %202 = vmatprep.subr.bf16.mxu0 0
    %203 = vmatpush2.bf16.msra.mxu0 0
    %204 = vmatprep.mubr.bf16.mxu0 0
    %205 = vmatmul.mubr.bf16.gmra.mxu0 %v163
    %v206 = vpop.f32.mrf.mxu0
    %v207 = vadd.f32 0.0, %v206
    %v208 = vpop.f32.mrf.mxu0
    %v209 = vpop.f32.mrf.mxu0
    %v210 = vadd.f32 0.0, %v209
    %v211 = vpop.f32.mrf.mxu0
    %212 = vmatprep.mubr.bf16.mxu0 0
    %213 = vmatmul.mubr.bf16.gmra.mxu0 %v166
    %v214 = vpop.f32.mrf.mxu0
    %v215 = vadd.f32 0.0, %v214
    %v216 = vpop.f32.mrf.mxu0
    %v217 = vpop.f32.mrf.mxu0
    %v218 = vadd.f32 0.0, %v217
    %v219 = vpop.f32.mrf.mxu0
    %220 = vdwg.mxu0
    %v230 = vunpack.c.l.b16 %v88
    %v231 = vunpack.c.l.b16 %v89
    %v232 = vunpack.c.l.b16 %v90
    %v233 = vunpack.c.l.b16 %v91
    %v234 = vunpack.c.l.b16 %v92
    %v235 = vunpack.c.l.b16 %v93
    %v236 = vunpack.c.l.b16 %v94
    %v237 = vunpack.c.l.b16 %v95
    %v238 = vunpack.c.l.b16 %v96
    %v239 = vpack.c.b16 %v231, %v230
    %v240 = vpack.c.b16 %v233, %v232
    %v241 = vpack.c.b16 %v235, %v234
    %v242 = vpack.c.b16 %v237, %v236
    %v243 = vpack.c.b16 %v238, %v238
    %v249 = vsel %vm161, %v86, 0
    %v252 = vsel %vm161, %v87, 0
    %v255 = vsel %vm168, %v243, 0
    %257 = vmatprep.subr.bf16.mxu0 0
    %258 = vmatpush1.bf16.msra.mxu0 0
    %259 = vmatprep.subr.bf16.mxu0 0
    %260 = vmatpush1.bf16.msra.mxu0 0
    %261 = vmatprep.subr.bf16.mxu0 0
    %262 = vmatpush1.bf16.msra.mxu0 0
    %263 = vmatprep.subr.bf16.mxu0 0
    %264 = vmatpush1.bf16.msra.mxu0 %v255
    %265 = vmatprep.subr.bf16.mxu0 0
    %266 = vmatpush1.bf16.msra.mxu0 %v242
    %267 = vmatprep.subr.bf16.mxu0 0
    %268 = vmatpush1.bf16.msra.mxu0 %v241
    %269 = vmatprep.subr.bf16.mxu0 0
    %270 = vmatpush1.bf16.msra.mxu0 %v240
    %271 = vmatprep.subr.bf16.mxu0 0
    %272 = vmatpush1.bf16.msra.mxu0 %v239
    %273 = vmatprep.subr.bf16.mxu0 0
    %274 = vmatpush2.bf16.msra.mxu0 0
    %275 = vmatprep.subr.bf16.mxu0 0
    %276 = vmatpush2.bf16.msra.mxu0 0
    %277 = vmatprep.subr.bf16.mxu0 0
    %278 = vmatpush2.bf16.msra.mxu0 0
    %279 = vmatprep.subr.bf16.mxu0 0
    %280 = vmatpush2.bf16.msra.mxu0 0
    %281 = vmatprep.subr.bf16.mxu0 0
    %282 = vmatpush2.bf16.msra.mxu0 0
    %283 = vmatprep.subr.bf16.mxu0 0
    %284 = vmatpush2.bf16.msra.mxu0 0
    %285 = vmatprep.subr.bf16.mxu0 0
    %286 = vmatpush2.bf16.msra.mxu0 0
    %287 = vmatprep.subr.bf16.mxu0 0
    %288 = vmatpush2.bf16.msra.mxu0 0
    %289 = vmatprep.mubr.bf16.mxu0 0
    %290 = vmatmul.mubr.bf16.gmra.mxu0 %v249
    %v291 = vpop.f32.mrf.mxu0
    %v292 = vadd.f32 %v207, %v291
    %v293 = vpop.f32.mrf.mxu0
    %v294 = vpop.f32.mrf.mxu0
    %v295 = vadd.f32 %v210, %v294
    %v296 = vpop.f32.mrf.mxu0
    %297 = vmatprep.mubr.bf16.mxu0 0
    %298 = vmatmul.mubr.bf16.gmra.mxu0 %v252
    %v299 = vpop.f32.mrf.mxu0
    %v300 = vadd.f32 %v215, %v299
    %v301 = vpop.f32.mrf.mxu0
    %v302 = vpop.f32.mrf.mxu0
    %v303 = vadd.f32 %v218, %v302
    %v304 = vpop.f32.mrf.mxu0
    %305 = vdwg.mxu0
    %v306 = vld [vmem:[#allocation2] sm:$0xfc]
    %v307 = vld [vmem:[#allocation2 + $0x20] sm:$0x3]
    %v308 = vld [vmem:[#allocation2 + $0x30] sm:$0xfc]
    %v309 = vld [vmem:[#allocation2 + $0x50] sm:$0x3]
    %vm314 = vcmask 1045504
    %v315 = vrot.slane %v306, 2
    %v316 = vrot.slane %v83, 2
    %v317 = vsel %vm314, %v315, %v316
    %v318 = vrot.slane %v307, 2
    %v319 = vsel %vm314, %v316, %v318
    %v320 = vrot.slane %v308, 2
    %v321 = vrot.slane %v85, 2
    %v322 = vsel %vm314, %v320, %v321
    %v323 = vrot.slane %v309, 2
    %v324 = vsel %vm314, %v321, %v323
    %v329 = vpack.c.bf16 %v319, %v317
    %v330 = vpack.c.bf16 %v324, %v322
    %s331 = scalar_lea.vmem [#allocation3], 72
    %v332 = vld [vmem:[%s331] sm:$0xf]
    %v333 = vld [vmem:[%s331 + $0x4] sm:$0xf]
    %v334 = vld [vmem:[%s331 + $0x8] sm:$0xf]
    %v335 = vld [vmem:[%s331 + $0xc] sm:$0xf]
    %v336 = vld [vmem:[%s331 + $0x10] sm:$0xf]
    %v337 = vld [vmem:[%s331 + $0x14] sm:$0xf]
    %v338 = vld [vmem:[%s331 + $0x18] sm:$0xf]
    %v339 = vld [vmem:[%s331 + $0x1c] sm:$0xf]
    %v340 = vld [vmem:[%s331 + $0x20] sm:$0xf]
    %v350 = vunpack.c.l.b16 %v332
    %v351 = vunpack.c.l.b16 %v333
    %v352 = vunpack.c.l.b16 %v334
    %v353 = vunpack.c.l.b16 %v335
    %v354 = vunpack.c.l.b16 %v336
    %v355 = vunpack.c.l.b16 %v337
    %v356 = vunpack.c.l.b16 %v338
    %v357 = vunpack.c.l.b16 %v339
    %v358 = vunpack.c.l.b16 %v340
    %v359 = vpack.c.b16 %v351, %v350
    %v360 = vpack.c.b16 %v353, %v352
    %v361 = vpack.c.b16 %v355, %v354
    %v362 = vpack.c.b16 %v357, %v356
    %v363 = vpack.c.b16 %v358, %v358
    %v369 = vsel %vm161, %v329, 0
    %v372 = vsel %vm161, %v330, 0
    %v375 = vsel %vm168, %v363, 0
    %377 = vmatprep.subr.bf16.mxu0 0
    %378 = vmatpush1.bf16.msra.mxu0 0
    %379 = vmatprep.subr.bf16.mxu0 0
    %380 = vmatpush1.bf16.msra.mxu0 0
    %381 = vmatprep.subr.bf16.mxu0 0
    %382 = vmatpush1.bf16.msra.mxu0 0
    %383 = vmatprep.subr.bf16.mxu0 0
    %384 = vmatpush1.bf16.msra.mxu0 %v375
    %385 = vmatprep.subr.bf16.mxu0 0
    %386 = vmatpush1.bf16.msra.mxu0 %v362
    %387 = vmatprep.subr.bf16.mxu0 0
    %388 = vmatpush1.bf16.msra.mxu0 %v361
    %389 = vmatprep.subr.bf16.mxu0 0
    %390 = vmatpush1.bf16.msra.mxu0 %v360
    %391 = vmatprep.subr.bf16.mxu0 0
    %392 = vmatpush1.bf16.msra.mxu0 %v359
    %393 = vmatprep.subr.bf16.mxu0 0
    %394 = vmatpush2.bf16.msra.mxu0 0
    %395 = vmatprep.subr.bf16.mxu0 0
    %396 = vmatpush2.bf16.msra.mxu0 0
    %397 = vmatprep.subr.bf16.mxu0 0
    %398 = vmatpush2.bf16.msra.mxu0 0
    %399 = vmatprep.subr.bf16.mxu0 0
    %400 = vmatpush2.bf16.msra.mxu0 0
    %401 = vmatprep.subr.bf16.mxu0 0
    %402 = vmatpush2.bf16.msra.mxu0 0
    %403 = vmatprep.subr.bf16.mxu0 0
    %404 = vmatpush2.bf16.msra.mxu0 0
    %405 = vmatprep.subr.bf16.mxu0 0
    %406 = vmatpush2.bf16.msra.mxu0 0
    %407 = vmatprep.subr.bf16.mxu0 0
    %408 = vmatpush2.bf16.msra.mxu0 0
    %409 = vmatprep.mubr.bf16.mxu0 0
    %410 = vmatmul.mubr.bf16.gmra.mxu0 %v369
    %v411 = vpop.f32.mrf.mxu0
    %v412 = vadd.f32 0.0, %v411
    %v413 = vpop.f32.mrf.mxu0
    %v414 = vpop.f32.mrf.mxu0
    %v415 = vadd.f32 0.0, %v414
    %v416 = vpop.f32.mrf.mxu0
    %417 = vmatprep.mubr.bf16.mxu0 0
    %418 = vmatmul.mubr.bf16.gmra.mxu0 %v372
    %v419 = vpop.f32.mrf.mxu0
    %v420 = vadd.f32 0.0, %v419
    %v421 = vpop.f32.mrf.mxu0
    %v422 = vpop.f32.mrf.mxu0
    %v423 = vadd.f32 0.0, %v422
    %v424 = vpop.f32.mrf.mxu0
    %425 = vdwg.mxu0
    %v426 = vadd.f32 %v292, %v412
    %v427 = vadd.f32 %v295, %v415
    %v428 = vadd.f32 %v300, %v420
    %v429 = vadd.f32 %v303, %v423
    %v430 = vld [vmem:[%s2] sm:$0x1]
    %v432 = vlaneseq
    %v433 = vshrl.u32 %v432, 7
    %v434 = vsub.s32 0, %v433
    %v435 = vrot.slane %v430, %v434
    %v437 = vadd.f32 %v426, %v435
    %v438 = vadd.f32 %v427, %v435
    %v439 = vadd.f32 %v428, %v435
    %v440 = vadd.f32 %v429, %v435
    %v441 = vmax.f32 %v437, 0.0
    %v442 = vmax.f32 %v438, 0.0
    %v443 = vmax.f32 %v439, 0.0
    %v444 = vmax.f32 %v440, 0.0
    %v449 = vrot.slane %v441, 7
    %v450 = vrot.slane %v442, 7
    %v451 = vsel %vm63, %v449, %v450
    %v452 = vrot.slane %v443, 7
    %v453 = vrot.slane %v444, 7
    %v454 = vsel %vm63, %v452, %v453
    %461 = vst [vmem:[#allocation2] sm:$0xfe] %v449
    %462 = vst [vmem:[#allocation2 + $0x10] sm:$0xff] %v451
    %463 = vst [vmem:[#allocation2 + $0x20] sm:$0x1] %v450
    %464 = vst [vmem:[#allocation2 + $0x30] sm:$0xfe] %v452
    %465 = vst [vmem:[#allocation2 + $0x40] sm:$0xff] %v454
    %466 = vst [vmem:[#allocation2 + $0x50] sm:$0x1] %v453
    %v467 = vld [vmem:[#allocation2] sm:$0xff]
    %v468 = vld [vmem:[#allocation2 + $0x8] sm:$0xff]
    %v469 = vld [vmem:[#allocation2 + $0x10] sm:$0xff]
    %v470 = vld [vmem:[#allocation2 + $0x18] sm:$0xff]
    %v471 = vld [vmem:[#allocation2 + $0x30] sm:$0xff]
    %v472 = vld [vmem:[#allocation2 + $0x38] sm:$0xff]
    %v473 = vld [vmem:[#allocation2 + $0x40] sm:$0xff]
    %v474 = vld [vmem:[#allocation2 + $0x48] sm:$0xff]
    %v475 = vpack.c.bf16 %v469, %v467
    %v476 = vpack.c.bf16 %v470, %v468
    %v477 = vpack.c.bf16 %v473, %v471
    %v478 = vpack.c.bf16 %v474, %v472
    %v479 = vld [vmem:[%s3] sm:$0xf]
    %v480 = vld [vmem:[%s3 + $0x4] sm:$0xf]
    %v481 = vld [vmem:[%s3 + $0x8] sm:$0xf]
    %v482 = vld [vmem:[%s3 + $0xc] sm:$0xf]
    %v483 = vld [vmem:[%s3 + $0x10] sm:$0xf]
    %v484 = vld [vmem:[%s3 + $0x14] sm:$0xf]
    %v485 = vld [vmem:[%s3 + $0x18] sm:$0xf]
    %v486 = vld [vmem:[%s3 + $0x1c] sm:$0xf]
    %v487 = vld [vmem:[%s3 + $0x20] sm:$0xf]
    %v488 = vld [vmem:[%s3 + $0x24] sm:$0xf]
    %v489 = vld [vmem:[%s3 + $0x28] sm:$0xf]
    %v490 = vld [vmem:[%s3 + $0x2c] sm:$0xf]
    %v491 = vld [vmem:[%s3 + $0x30] sm:$0xf]
    %v492 = vld [vmem:[%s3 + $0x34] sm:$0xf]
    %v493 = vld [vmem:[%s3 + $0x38] sm:$0xf]
    %v494 = vld [vmem:[%s3 + $0x3c] sm:$0xf]
    %v495 = vld [vmem:[%s3 + $0x40] sm:$0xf]
    %v496 = vld [vmem:[%s3 + $0x44] sm:$0xf]
    %v497 = vld [vmem:[#allocation2] sm:$0xfe]
    %v498 = vld [vmem:[#allocation2 + $0x8] sm:$0xfe]
    %v499 = vld [vmem:[#allocation2 + $0x20] sm:$0x1]
    %v500 = vld [vmem:[#allocation2 + $0x28] sm:$0x1]
    %v501 = vld [vmem:[#allocation2 + $0x30] sm:$0xfe]
    %v502 = vld [vmem:[#allocation2 + $0x38] sm:$0xfe]
    %v503 = vld [vmem:[#allocation2 + $0x50] sm:$0x1]
    %v504 = vld [vmem:[#allocation2 + $0x58] sm:$0x1]
    %v517 = vrot.slane %v497, 1
    %v518 = vrot.slane %v469, 1
    %v519 = vsel %vm107, %v517, %v518
    %v520 = vrot.slane %v498, 1
    %v521 = vrot.slane %v470, 1
    %v522 = vsel %vm107, %v520, %v521
    %v523 = vrot.slane %v499, 1
    %v524 = vsel %vm107, %v518, %v523
    %v525 = vrot.slane %v500, 1
    %v526 = vsel %vm107, %v521, %v525
    %v527 = vrot.slane %v501, 1
    %v528 = vrot.slane %v473, 1
    %v529 = vsel %vm107, %v527, %v528
    %v530 = vrot.slane %v502, 1
    %v531 = vrot.slane %v474, 1
    %v532 = vsel %vm107, %v530, %v531
    %v533 = vrot.slane %v503, 1
    %v534 = vsel %vm107, %v528, %v533
    %v535 = vrot.slane %v504, 1
    %v536 = vsel %vm107, %v531, %v535
    %v545 = vpack.c.bf16 %v524, %v519
    %v546 = vpack.c.bf16 %v526, %v522
    %v547 = vpack.c.bf16 %v534, %v529
    %v548 = vpack.c.bf16 %v536, %v532
    %s549 = scalar_lea.vmem %s3, 72
    %v550 = vld [vmem:[%s549] sm:$0xf]
    %v551 = vld [vmem:[%s549 + $0x4] sm:$0xf]
    %v552 = vld [vmem:[%s549 + $0x8] sm:$0xf]
    %v553 = vld [vmem:[%s549 + $0xc] sm:$0xf]
    %v554 = vld [vmem:[%s549 + $0x10] sm:$0xf]
    %v555 = vld [vmem:[%s549 + $0x14] sm:$0xf]
    %v556 = vld [vmem:[%s549 + $0x18] sm:$0xf]
    %v557 = vld [vmem:[%s549 + $0x1c] sm:$0xf]
    %v558 = vld [vmem:[%s549 + $0x20] sm:$0xf]
    %v559 = vld [vmem:[%s549 + $0x24] sm:$0xf]
    %v560 = vld [vmem:[%s549 + $0x28] sm:$0xf]
    %v561 = vld [vmem:[%s549 + $0x2c] sm:$0xf]
    %v562 = vld [vmem:[%s549 + $0x30] sm:$0xf]
    %v563 = vld [vmem:[%s549 + $0x34] sm:$0xf]
    %v564 = vld [vmem:[%s549 + $0x38] sm:$0xf]
    %v565 = vld [vmem:[%s549 + $0x3c] sm:$0xf]
    %v566 = vld [vmem:[%s549 + $0x40] sm:$0xf]
    %v567 = vld [vmem:[%s549 + $0x44] sm:$0xf]
    %v586 = vunpack.c.l.b16 %v550
    %v587 = vunpack.c.l.b16 %v551
    %v588 = vunpack.c.l.b16 %v552
    %v589 = vunpack.c.l.b16 %v553
    %v590 = vunpack.c.l.b16 %v554
    %v591 = vunpack.c.l.b16 %v555
    %v592 = vunpack.c.l.b16 %v556
    %v593 = vunpack.c.l.b16 %v557
    %v594 = vunpack.c.l.b16 %v558
    %v595 = vunpack.c.l.b16 %v559
    %v596 = vunpack.c.l.b16 %v560
    %v597 = vunpack.c.l.b16 %v561
    %v598 = vunpack.c.l.b16 %v562
    %v599 = vunpack.c.l.b16 %v563
    %v600 = vunpack.c.l.b16 %v564
    %v601 = vunpack.c.l.b16 %v565
    %v602 = vunpack.c.l.b16 %v566
    %v603 = vunpack.c.l.b16 %v567
    %v604 = vpack.c.b16 %v587, %v586
    %v605 = vpack.c.b16 %v589, %v588
    %v606 = vpack.c.b16 %v591, %v590
    %v607 = vpack.c.b16 %v593, %v592
    %v608 = vpack.c.b16 %v595, %v594
    %v609 = vpack.c.b16 %v597, %v596
    %v610 = vpack.c.b16 %v599, %v598
    %v611 = vpack.c.b16 %v601, %v600
    %v612 = vpack.c.b16 %v603, %v602
    %v623 = vsel %vm42, %v546, 0
    %v626 = vsel %vm42, %v548, 0
    %628 = vmatprep.subr.bf16.mxu0 0
    %629 = vmatpush1.bf16.msra.mxu0 %v611
    %630 = vmatprep.subr.bf16.mxu0 0
    %631 = vmatpush1.bf16.msra.mxu0 %v610
    %632 = vmatprep.subr.bf16.mxu0 0
    %633 = vmatpush1.bf16.msra.mxu0 %v609
    %634 = vmatprep.subr.bf16.mxu0 0
    %635 = vmatpush1.bf16.msra.mxu0 %v608
    %636 = vmatprep.subr.bf16.mxu0 0
    %637 = vmatpush1.bf16.msra.mxu0 %v607
    %638 = vmatprep.subr.bf16.mxu0 0
    %639 = vmatpush1.bf16.msra.mxu0 %v606
    %640 = vmatprep.subr.bf16.mxu0 0
    %641 = vmatpush1.bf16.msra.mxu0 %v605
    %642 = vmatprep.subr.bf16.mxu0 0
    %643 = vmatpush1.bf16.msra.mxu0 %v604
    %644 = vmatprep.subr.bf16.mxu0 0
    %645 = vmatpush2.bf16.msra.mxu0 0
    %646 = vmatprep.subr.bf16.mxu0 0
    %647 = vmatpush2.bf16.msra.mxu0 0
    %648 = vmatprep.subr.bf16.mxu0 0
    %649 = vmatpush2.bf16.msra.mxu0 0
    %650 = vmatprep.subr.bf16.mxu0 0
    %651 = vmatpush2.bf16.msra.mxu0 0
    %652 = vmatprep.subr.bf16.mxu0 0
    %653 = vmatpush2.bf16.msra.mxu0 0
    %654 = vmatprep.subr.bf16.mxu0 0
    %655 = vmatpush2.bf16.msra.mxu0 0
    %656 = vmatprep.subr.bf16.mxu0 0
    %657 = vmatpush2.bf16.msra.mxu0 0
    %658 = vmatprep.subr.bf16.mxu0 0
    %659 = vmatpush2.bf16.msra.mxu0 %v612
    %660 = vmatprep.mubr.bf16.mxu0 %v623
    %661 = vmatmul.mubr.bf16.gmra.mxu0 %v545
    %v662 = vpop.f32.mrf.mxu0
    %v663 = vadd.f32 0.0, %v662
    %v664 = vpop.f32.mrf.mxu0
    %v665 = vpop.f32.mrf.mxu0
    %v666 = vadd.f32 0.0, %v665
    %v667 = vpop.f32.mrf.mxu0
    %668 = vmatprep.mubr.bf16.mxu0 %v626
    %669 = vmatmul.mubr.bf16.gmra.mxu0 %v547
    %v670 = vpop.f32.mrf.mxu0
    %v671 = vadd.f32 0.0, %v670
    %v672 = vpop.f32.mrf.mxu0
    %v673 = vpop.f32.mrf.mxu0
    %v674 = vadd.f32 0.0, %v673
    %v675 = vpop.f32.mrf.mxu0
    %676 = vdwg.mxu0
    %v695 = vunpack.c.l.b16 %v479
    %v696 = vunpack.c.l.b16 %v480
    %v697 = vunpack.c.l.b16 %v481
    %v698 = vunpack.c.l.b16 %v482
    %v699 = vunpack.c.l.b16 %v483
    %v700 = vunpack.c.l.b16 %v484
    %v701 = vunpack.c.l.b16 %v485
    %v702 = vunpack.c.l.b16 %v486
    %v703 = vunpack.c.l.b16 %v487
    %v704 = vunpack.c.l.b16 %v488
    %v705 = vunpack.c.l.b16 %v489
    %v706 = vunpack.c.l.b16 %v490
    %v707 = vunpack.c.l.b16 %v491
    %v708 = vunpack.c.l.b16 %v492
    %v709 = vunpack.c.l.b16 %v493
    %v710 = vunpack.c.l.b16 %v494
    %v711 = vunpack.c.l.b16 %v495
    %v712 = vunpack.c.l.b16 %v496
    %v713 = vpack.c.b16 %v696, %v695
    %v714 = vpack.c.b16 %v698, %v697
    %v715 = vpack.c.b16 %v700, %v699
    %v716 = vpack.c.b16 %v702, %v701
    %v717 = vpack.c.b16 %v704, %v703
    %v718 = vpack.c.b16 %v706, %v705
    %v719 = vpack.c.b16 %v708, %v707
    %v720 = vpack.c.b16 %v710, %v709
    %v721 = vpack.c.b16 %v712, %v711
    %v732 = vsel %vm42, %v476, 0
    %v735 = vsel %vm42, %v478, 0
    %737 = vmatprep.subr.bf16.mxu0 0
    %738 = vmatpush1.bf16.msra.mxu0 %v720
    %739 = vmatprep.subr.bf16.mxu0 0
    %740 = vmatpush1.bf16.msra.mxu0 %v719
    %741 = vmatprep.subr.bf16.mxu0 0
    %742 = vmatpush1.bf16.msra.mxu0 %v718
    %743 = vmatprep.subr.bf16.mxu0 0
    %744 = vmatpush1.bf16.msra.mxu0 %v717
    %745 = vmatprep.subr.bf16.mxu0 0
    %746 = vmatpush1.bf16.msra.mxu0 %v716
    %747 = vmatprep.subr.bf16.mxu0 0
    %748 = vmatpush1.bf16.msra.mxu0 %v715
    %749 = vmatprep.subr.bf16.mxu0 0
    %750 = vmatpush1.bf16.msra.mxu0 %v714
    %751 = vmatprep.subr.bf16.mxu0 0
    %752 = vmatpush1.bf16.msra.mxu0 %v713
    %753 = vmatprep.subr.bf16.mxu0 0
    %754 = vmatpush2.bf16.msra.mxu0 0
    %755 = vmatprep.subr.bf16.mxu0 0
    %756 = vmatpush2.bf16.msra.mxu0 0
    %757 = vmatprep.subr.bf16.mxu0 0
    %758 = vmatpush2.bf16.msra.mxu0 0
    %759 = vmatprep.subr.bf16.mxu0 0
    %760 = vmatpush2.bf16.msra.mxu0 0
    %761 = vmatprep.subr.bf16.mxu0 0
    %762 = vmatpush2.bf16.msra.mxu0 0
    %763 = vmatprep.subr.bf16.mxu0 0
    %764 = vmatpush2.bf16.msra.mxu0 0
    %765 = vmatprep.subr.bf16.mxu0 0
    %766 = vmatpush2.bf16.msra.mxu0 0
    %767 = vmatprep.subr.bf16.mxu0 0
    %768 = vmatpush2.bf16.msra.mxu0 %v721
    %769 = vmatprep.mubr.bf16.mxu0 %v732
    %770 = vmatmul.mubr.bf16.gmra.mxu0 %v475
    %v771 = vpop.f32.mrf.mxu0
    %v772 = vadd.f32 %v663, %v771
    %v773 = vpop.f32.mrf.mxu0
    %v774 = vpop.f32.mrf.mxu0
    %v775 = vadd.f32 %v666, %v774
    %v776 = vpop.f32.mrf.mxu0
    %777 = vmatprep.mubr.bf16.mxu0 %v735
    %778 = vmatmul.mubr.bf16.gmra.mxu0 %v477
    %v779 = vpop.f32.mrf.mxu0
    %v780 = vadd.f32 %v671, %v779
    %v781 = vpop.f32.mrf.mxu0
    %v782 = vpop.f32.mrf.mxu0
    %v783 = vadd.f32 %v674, %v782
    %v784 = vpop.f32.mrf.mxu0
    %785 = vdwg.mxu0
    %v786 = vld [vmem:[#allocation2] sm:$0xfc]
    %v787 = vld [vmem:[#allocation2 + $0x8] sm:$0xfc]
    %v788 = vld [vmem:[#allocation2 + $0x20] sm:$0x3]
    %v789 = vld [vmem:[#allocation2 + $0x28] sm:$0x3]
    %v790 = vld [vmem:[#allocation2 + $0x30] sm:$0xfc]
    %v791 = vld [vmem:[#allocation2 + $0x38] sm:$0xfc]
    %v792 = vld [vmem:[#allocation2 + $0x50] sm:$0x3]
    %v793 = vld [vmem:[#allocation2 + $0x58] sm:$0x3]
    %v802 = vrot.slane %v786, 2
    %v803 = vrot.slane %v469, 2
    %v804 = vsel %vm314, %v802, %v803
    %v805 = vrot.slane %v787, 2
    %v806 = vrot.slane %v470, 2
    %v807 = vsel %vm314, %v805, %v806
    %v808 = vrot.slane %v788, 2
    %v809 = vsel %vm314, %v803, %v808
    %v810 = vrot.slane %v789, 2
    %v811 = vsel %vm314, %v806, %v810
    %v812 = vrot.slane %v790, 2
    %v813 = vrot.slane %v473, 2
    %v814 = vsel %vm314, %v812, %v813
    %v815 = vrot.slane %v791, 2
    %v816 = vrot.slane %v474, 2
    %v817 = vsel %vm314, %v815, %v816
    %v818 = vrot.slane %v792, 2
    %v819 = vsel %vm314, %v813, %v818
    %v820 = vrot.slane %v793, 2
    %v821 = vsel %vm314, %v816, %v820
    %v830 = vpack.c.bf16 %v809, %v804
    %v831 = vpack.c.bf16 %v811, %v807
    %v832 = vpack.c.bf16 %v819, %v814
    %v833 = vpack.c.bf16 %v821, %v817
    %s834 = scalar_lea.vmem %s3, 144
    %v835 = vld [vmem:[%s834] sm:$0xf]
    %v836 = vld [vmem:[%s834 + $0x4] sm:$0xf]
    %v837 = vld [vmem:[%s834 + $0x8] sm:$0xf]
    %v838 = vld [vmem:[%s834 + $0xc] sm:$0xf]
    %v839 = vld [vmem:[%s834 + $0x10] sm:$0xf]
    %v840 = vld [vmem:[%s834 + $0x14] sm:$0xf]
    %v841 = vld [vmem:[%s834 + $0x18] sm:$0xf]
    %v842 = vld [vmem:[%s834 + $0x1c] sm:$0xf]
    %v843 = vld [vmem:[%s834 + $0x20] sm:$0xf]
    %v844 = vld [vmem:[%s834 + $0x24] sm:$0xf]
    %v845 = vld [vmem:[%s834 + $0x28] sm:$0xf]
    %v846 = vld [vmem:[%s834 + $0x2c] sm:$0xf]
    %v847 = vld [vmem:[%s834 + $0x30] sm:$0xf]
    %v848 = vld [vmem:[%s834 + $0x34] sm:$0xf]
    %v849 = vld [vmem:[%s834 + $0x38] sm:$0xf]
    %v850 = vld [vmem:[%s834 + $0x3c] sm:$0xf]
    %v851 = vld [vmem:[%s834 + $0x40] sm:$0xf]
    %v852 = vld [vmem:[%s834 + $0x44] sm:$0xf]
    %v871 = vunpack.c.l.b16 %v835
    %v872 = vunpack.c.l.b16 %v836
    %v873 = vunpack.c.l.b16 %v837
    %v874 = vunpack.c.l.b16 %v838
    %v875 = vunpack.c.l.b16 %v839
    %v876 = vunpack.c.l.b16 %v840
    %v877 = vunpack.c.l.b16 %v841
    %v878 = vunpack.c.l.b16 %v842
    %v879 = vunpack.c.l.b16 %v843
    %v880 = vunpack.c.l.b16 %v844
    %v881 = vunpack.c.l.b16 %v845
    %v882 = vunpack.c.l.b16 %v846
    %v883 = vunpack.c.l.b16 %v847
    %v884 = vunpack.c.l.b16 %v848
    %v885 = vunpack.c.l.b16 %v849
    %v886 = vunpack.c.l.b16 %v850
    %v887 = vunpack.c.l.b16 %v851
    %v888 = vunpack.c.l.b16 %v852
    %v889 = vpack.c.b16 %v872, %v871
    %v890 = vpack.c.b16 %v874, %v873
    %v891 = vpack.c.b16 %v876, %v875
    %v892 = vpack.c.b16 %v878, %v877
    %v893 = vpack.c.b16 %v880, %v879
    %v894 = vpack.c.b16 %v882, %v881
    %v895 = vpack.c.b16 %v884, %v883
    %v896 = vpack.c.b16 %v886, %v885
    %v897 = vpack.c.b16 %v888, %v887
    %v908 = vsel %vm42, %v831, 0
    %v911 = vsel %vm42, %v833, 0
    %913 = vmatprep.subr.bf16.mxu0 0
    %914 = vmatpush1.bf16.msra.mxu0 %v896
    %915 = vmatprep.subr.bf16.mxu0 0
    %916 = vmatpush1.bf16.msra.mxu0 %v895
    %917 = vmatprep.subr.bf16.mxu0 0
    %918 = vmatpush1.bf16.msra.mxu0 %v894
    %919 = vmatprep.subr.bf16.mxu0 0
    %920 = vmatpush1.bf16.msra.mxu0 %v893
    %921 = vmatprep.subr.bf16.mxu0 0
    %922 = vmatpush1.bf16.msra.mxu0 %v892
    %923 = vmatprep.subr.bf16.mxu0 0
    %924 = vmatpush1.bf16.msra.mxu0 %v891
    %925 = vmatprep.subr.bf16.mxu0 0
    %926 = vmatpush1.bf16.msra.mxu0 %v890
    %927 = vmatprep.subr.bf16.mxu0 0
    %928 = vmatpush1.bf16.msra.mxu0 %v889
    %929 = vmatprep.subr.bf16.mxu0 0
    %930 = vmatpush2.bf16.msra.mxu0 0
    %931 = vmatprep.subr.bf16.mxu0 0
    %932 = vmatpush2.bf16.msra.mxu0 0
    %933 = vmatprep.subr.bf16.mxu0 0
    %934 = vmatpush2.bf16.msra.mxu0 0
    %935 = vmatprep.subr.bf16.mxu0 0
    %936 = vmatpush2.bf16.msra.mxu0 0
    %937 = vmatprep.subr.bf16.mxu0 0
    %938 = vmatpush2.bf16.msra.mxu0 0
    %939 = vmatprep.subr.bf16.mxu0 0
    %940 = vmatpush2.bf16.msra.mxu0 0
    %941 = vmatprep.subr.bf16.mxu0 0
    %942 = vmatpush2.bf16.msra.mxu0 0
    %943 = vmatprep.subr.bf16.mxu0 0
    %944 = vmatpush2.bf16.msra.mxu0 %v897
    %945 = vmatprep.mubr.bf16.mxu0 %v908
    %946 = vmatmul.mubr.bf16.gmra.mxu0 %v830
    %v947 = vpop.f32.mrf.mxu0
    %v948 = vadd.f32 0.0, %v947
    %v949 = vpop.f32.mrf.mxu0
    %v950 = vpop.f32.mrf.mxu0
    %v951 = vadd.f32 0.0, %v950
    %v952 = vpop.f32.mrf.mxu0
    %953 = vmatprep.mubr.bf16.mxu0 %v911
    %954 = vmatmul.mubr.bf16.gmra.mxu0 %v832
    %v955 = vpop.f32.mrf.mxu0
    %v956 = vadd.f32 0.0, %v955
    %v957 = vpop.f32.mrf.mxu0
    %v958 = vpop.f32.mrf.mxu0
    %v959 = vadd.f32 0.0, %v958
    %v960 = vpop.f32.mrf.mxu0
    %961 = vdwg.mxu0
    %v962 = vadd.f32 %v772, %v948
    %v963 = vadd.f32 %v775, %v951
    %v964 = vadd.f32 %v780, %v956
    %v965 = vadd.f32 %v783, %v959
    %v966 = vld [vmem:[%s4] sm:$0x1]
    %v968 = vlaneseq
    %v969 = vshrl.u32 %v968, 7
    %v970 = vsub.s32 0, %v969
    %v971 = vrot.slane %v966, %v970
    %v973 = vadd.f32 %v962, %v971
    %v974 = vadd.f32 %v963, %v971
    %v975 = vadd.f32 %v964, %v971
    %v976 = vadd.f32 %v965, %v971
    %v977 = vmax.f32 %v973, 0.0
    %v978 = vmax.f32 %v974, 0.0
    %v979 = vmax.f32 %v975, 0.0
    %v980 = vmax.f32 %v976, 0.0
    %v985 = vrot.slane %v977, 7
    %v986 = vrot.slane %v978, 7
    %v987 = vsel %vm63, %v985, %v986
    %v988 = vrot.slane %v979, 7
    %v989 = vrot.slane %v980, 7
    %v990 = vsel %vm63, %v988, %v989
    %997 = vst [vmem:[#allocation2] sm:$0xfe] %v985
    %998 = vst [vmem:[#allocation2 + $0x10] sm:$0xff] %v987
    %999 = vst [vmem:[#allocation2 + $0x20] sm:$0x1] %v986
    %1000 = vst [vmem:[#allocation2 + $0x30] sm:$0xfe] %v988
    %1001 = vst [vmem:[#allocation2 + $0x40] sm:$0xff] %v990
    %1002 = vst [vmem:[#allocation2 + $0x50] sm:$0x1] %v989
    %v1003 = vld [vmem:[#allocation2] sm:$0xff]
    %v1004 = vld [vmem:[#allocation2 + $0x8] sm:$0xff]
    %v1005 = vld [vmem:[#allocation2 + $0x10] sm:$0xff]
    %v1006 = vld [vmem:[#allocation2 + $0x18] sm:$0xff]
    %v1007 = vld [vmem:[#allocation2 + $0x30] sm:$0xff]
    %v1008 = vld [vmem:[#allocation2 + $0x38] sm:$0xff]
    %v1009 = vld [vmem:[#allocation2 + $0x40] sm:$0xff]
    %v1010 = vld [vmem:[#allocation2 + $0x48] sm:$0xff]
    %v1011 = vpack.c.bf16 %v1005, %v1003
    %v1012 = vpack.c.bf16 %v1006, %v1004
    %v1013 = vpack.c.bf16 %v1009, %v1007
    %v1014 = vpack.c.bf16 %v1010, %v1008
    %v1015 = vld [vmem:[%s5] sm:$0xf]
    %v1016 = vld [vmem:[%s5 + $0x4] sm:$0xf]
    %v1017 = vld [vmem:[%s5 + $0x8] sm:$0xf]
    %v1018 = vld [vmem:[%s5 + $0xc] sm:$0xf]
    %v1019 = vld [vmem:[%s5 + $0x10] sm:$0xf]
    %v1020 = vld [vmem:[%s5 + $0x14] sm:$0xf]
    %v1021 = vld [vmem:[%s5 + $0x18] sm:$0xf]
    %v1022 = vld [vmem:[%s5 + $0x1c] sm:$0xf]
    %v1023 = vld [vmem:[%s5 + $0x20] sm:$0xf]
    %v1024 = vld [vmem:[%s5 + $0x24] sm:$0xf]
    %v1025 = vld [vmem:[%s5 + $0x28] sm:$0xf]
    %v1026 = vld [vmem:[%s5 + $0x2c] sm:$0xf]
    %v1027 = vld [vmem:[%s5 + $0x30] sm:$0xf]
    %v1028 = vld [vmem:[%s5 + $0x34] sm:$0xf]
    %v1029 = vld [vmem:[%s5 + $0x38] sm:$0xf]
    %v1030 = vld [vmem:[%s5 + $0x3c] sm:$0xf]
    %v1031 = vld [vmem:[%s5 + $0x40] sm:$0xf]
    %v1032 = vld [vmem:[%s5 + $0x44] sm:$0xf]
    %v1033 = vld [vmem:[#allocation2] sm:$0xfe]
    %v1034 = vld [vmem:[#allocation2 + $0x8] sm:$0xfe]
    %v1035 = vld [vmem:[#allocation2 + $0x20] sm:$0x1]
    %v1036 = vld [vmem:[#allocation2 + $0x28] sm:$0x1]
    %v1037 = vld [vmem:[#allocation2 + $0x30] sm:$0xfe]
    %v1038 = vld [vmem:[#allocation2 + $0x38] sm:$0xfe]
    %v1039 = vld [vmem:[#allocation2 + $0x50] sm:$0x1]
    %v1040 = vld [vmem:[#allocation2 + $0x58] sm:$0x1]
    %v1053 = vrot.slane %v1033, 1
    %v1054 = vrot.slane %v1005, 1
    %v1055 = vsel %vm107, %v1053, %v1054
    %v1056 = vrot.slane %v1034, 1
    %v1057 = vrot.slane %v1006, 1
    %v1058 = vsel %vm107, %v1056, %v1057
    %v1059 = vrot.slane %v1035, 1
    %v1060 = vsel %vm107, %v1054, %v1059
    %v1061 = vrot.slane %v1036, 1
    %v1062 = vsel %vm107, %v1057, %v1061
    %v1063 = vrot.slane %v1037, 1
    %v1064 = vrot.slane %v1009, 1
    %v1065 = vsel %vm107, %v1063, %v1064
    %v1066 = vrot.slane %v1038, 1
    %v1067 = vrot.slane %v1010, 1
    %v1068 = vsel %vm107, %v1066, %v1067
    %v1069 = vrot.slane %v1039, 1
    %v1070 = vsel %vm107, %v1064, %v1069
    %v1071 = vrot.slane %v1040, 1
    %v1072 = vsel %vm107, %v1067, %v1071
    %v1081 = vpack.c.bf16 %v1060, %v1055
    %v1082 = vpack.c.bf16 %v1062, %v1058
    %v1083 = vpack.c.bf16 %v1070, %v1065
    %v1084 = vpack.c.bf16 %v1072, %v1068
    %s1085 = scalar_lea.vmem %s5, 72
    %v1086 = vld [vmem:[%s1085] sm:$0xf]
    %v1087 = vld [vmem:[%s1085 + $0x4] sm:$0xf]
    %v1088 = vld [vmem:[%s1085 + $0x8] sm:$0xf]
    %v1089 = vld [vmem:[%s1085 + $0xc] sm:$0xf]
    %v1090 = vld [vmem:[%s1085 + $0x10] sm:$0xf]
    %v1091 = vld [vmem:[%s1085 + $0x14] sm:$0xf]
    %v1092 = vld [vmem:[%s1085 + $0x18] sm:$0xf]
    %v1093 = vld [vmem:[%s1085 + $0x1c] sm:$0xf]
    %v1094 = vld [vmem:[%s1085 + $0x20] sm:$0xf]
    %v1095 = vld [vmem:[%s1085 + $0x24] sm:$0xf]
    %v1096 = vld [vmem:[%s1085 + $0x28] sm:$0xf]
    %v1097 = vld [vmem:[%s1085 + $0x2c] sm:$0xf]
    %v1098 = vld [vmem:[%s1085 + $0x30] sm:$0xf]
    %v1099 = vld [vmem:[%s1085 + $0x34] sm:$0xf]
    %v1100 = vld [vmem:[%s1085 + $0x38] sm:$0xf]
    %v1101 = vld [vmem:[%s1085 + $0x3c] sm:$0xf]
    %v1102 = vld [vmem:[%s1085 + $0x40] sm:$0xf]
    %v1103 = vld [vmem:[%s1085 + $0x44] sm:$0xf]
    %v1122 = vunpack.c.l.b16 %v1086
    %v1123 = vunpack.c.l.b16 %v1087
    %v1124 = vunpack.c.l.b16 %v1088
    %v1125 = vunpack.c.l.b16 %v1089
    %v1126 = vunpack.c.l.b16 %v1090
    %v1127 = vunpack.c.l.b16 %v1091
    %v1128 = vunpack.c.l.b16 %v1092
    %v1129 = vunpack.c.l.b16 %v1093
    %v1130 = vunpack.c.l.b16 %v1094
    %v1131 = vunpack.c.l.b16 %v1095
    %v1132 = vunpack.c.l.b16 %v1096
    %v1133 = vunpack.c.l.b16 %v1097
    %v1134 = vunpack.c.l.b16 %v1098
    %v1135 = vunpack.c.l.b16 %v1099
    %v1136 = vunpack.c.l.b16 %v1100
    %v1137 = vunpack.c.l.b16 %v1101
    %v1138 = vunpack.c.l.b16 %v1102
    %v1139 = vunpack.c.l.b16 %v1103
    %v1140 = vpack.c.b16 %v1123, %v1122
    %v1141 = vpack.c.b16 %v1125, %v1124
    %v1142 = vpack.c.b16 %v1127, %v1126
    %v1143 = vpack.c.b16 %v1129, %v1128
    %v1144 = vpack.c.b16 %v1131, %v1130
    %v1145 = vpack.c.b16 %v1133, %v1132
    %v1146 = vpack.c.b16 %v1135, %v1134
    %v1147 = vpack.c.b16 %v1137, %v1136
    %v1148 = vpack.c.b16 %v1139, %v1138
    %v1159 = vsel %vm42, %v1082, 0
    %v1162 = vsel %vm42, %v1084, 0
    %1164 = vmatprep.subr.bf16.mxu0 0
    %1165 = vmatpush1.bf16.msra.mxu0 %v1147
    %1166 = vmatprep.subr.bf16.mxu0 0
    %1167 = vmatpush1.bf16.msra.mxu0 %v1146
    %1168 = vmatprep.subr.bf16.mxu0 0
    %1169 = vmatpush1.bf16.msra.mxu0 %v1145
    %1170 = vmatprep.subr.bf16.mxu0 0
    %1171 = vmatpush1.bf16.msra.mxu0 %v1144
    %1172 = vmatprep.subr.bf16.mxu0 0
    %1173 = vmatpush1.bf16.msra.mxu0 %v1143
    %1174 = vmatprep.subr.bf16.mxu0 0
    %1175 = vmatpush1.bf16.msra.mxu0 %v1142
    %1176 = vmatprep.subr.bf16.mxu0 0
    %1177 = vmatpush1.bf16.msra.mxu0 %v1141
    %1178 = vmatprep.subr.bf16.mxu0 0
    %1179 = vmatpush1.bf16.msra.mxu0 %v1140
    %1180 = vmatprep.subr.bf16.mxu0 0
    %1181 = vmatpush2.bf16.msra.mxu0 0
    %1182 = vmatprep.subr.bf16.mxu0 0
    %1183 = vmatpush2.bf16.msra.mxu0 0
    %1184 = vmatprep.subr.bf16.mxu0 0
    %1185 = vmatpush2.bf16.msra.mxu0 0
    %1186 = vmatprep.subr.bf16.mxu0 0
    %1187 = vmatpush2.bf16.msra.mxu0 0
    %1188 = vmatprep.subr.bf16.mxu0 0
    %1189 = vmatpush2.bf16.msra.mxu0 0
    %1190 = vmatprep.subr.bf16.mxu0 0
    %1191 = vmatpush2.bf16.msra.mxu0 0
    %1192 = vmatprep.subr.bf16.mxu0 0
    %1193 = vmatpush2.bf16.msra.mxu0 0
    %1194 = vmatprep.subr.bf16.mxu0 0
    %1195 = vmatpush2.bf16.msra.mxu0 %v1148
    %1196 = vmatprep.mubr.bf16.mxu0 %v1159
    %1197 = vmatmul.mubr.bf16.gmra.mxu0 %v1081
    %v1198 = vpop.f32.mrf.mxu0
    %v1199 = vadd.f32 0.0, %v1198
    %v1200 = vpop.f32.mrf.mxu0
    %v1201 = vpop.f32.mrf.mxu0
    %v1202 = vadd.f32 0.0, %v1201
    %v1203 = vpop.f32.mrf.mxu0
    %1204 = vmatprep.mubr.bf16.mxu0 %v1162
    %1205 = vmatmul.mubr.bf16.gmra.mxu0 %v1083
    %v1206 = vpop.f32.mrf.mxu0
    %v1207 = vadd.f32 0.0, %v1206
    %v1208 = vpop.f32.mrf.mxu0
    %v1209 = vpop.f32.mrf.mxu0
    %v1210 = vadd.f32 0.0, %v1209
    %v1211 = vpop.f32.mrf.mxu0
    %1212 = vdwg.mxu0
    %v1231 = vunpack.c.l.b16 %v1015
    %v1232 = vunpack.c.l.b16 %v1016
    %v1233 = vunpack.c.l.b16 %v1017
    %v1234 = vunpack.c.l.b16 %v1018
    %v1235 = vunpack.c.l.b16 %v1019
    %v1236 = vunpack.c.l.b16 %v1020
    %v1237 = vunpack.c.l.b16 %v1021
    %v1238 = vunpack.c.l.b16 %v1022
    %v1239 = vunpack.c.l.b16 %v1023
    %v1240 = vunpack.c.l.b16 %v1024
    %v1241 = vunpack.c.l.b16 %v1025
    %v1242 = vunpack.c.l.b16 %v1026
    %v1243 = vunpack.c.l.b16 %v1027
    %v1244 = vunpack.c.l.b16 %v1028
    %v1245 = vunpack.c.l.b16 %v1029
    %v1246 = vunpack.c.l.b16 %v1030
    %v1247 = vunpack.c.l.b16 %v1031
    %v1248 = vunpack.c.l.b16 %v1032
    %v1249 = vpack.c.b16 %v1232, %v1231
    %v1250 = vpack.c.b16 %v1234, %v1233
    %v1251 = vpack.c.b16 %v1236, %v1235
    %v1252 = vpack.c.b16 %v1238, %v1237
    %v1253 = vpack.c.b16 %v1240, %v1239
    %v1254 = vpack.c.b16 %v1242, %v1241
    %v1255 = vpack.c.b16 %v1244, %v1243
    %v1256 = vpack.c.b16 %v1246, %v1245
    %v1257 = vpack.c.b16 %v1248, %v1247
    %v1268 = vsel %vm42, %v1012, 0
    %v1271 = vsel %vm42, %v1014, 0
    %1273 = vmatprep.subr.bf16.mxu0 0
    %1274 = vmatpush1.bf16.msra.mxu0 %v1256
    %1275 = vmatprep.subr.bf16.mxu0 0
    %1276 = vmatpush1.bf16.msra.mxu0 %v1255
    %1277 = vmatprep.subr.bf16.mxu0 0
    %1278 = vmatpush1.bf16.msra.mxu0 %v1254
    %1279 = vmatprep.subr.bf16.mxu0 0
    %1280 = vmatpush1.bf16.msra.mxu0 %v1253
    %1281 = vmatprep.subr.bf16.mxu0 0
    %1282 = vmatpush1.bf16.msra.mxu0 %v1252
    %1283 = vmatprep.subr.bf16.mxu0 0
    %1284 = vmatpush1.bf16.msra.mxu0 %v1251
    %1285 = vmatprep.subr.bf16.mxu0 0
    %1286 = vmatpush1.bf16.msra.mxu0 %v1250
    %1287 = vmatprep.subr.bf16.mxu0 0
    %1288 = vmatpush1.bf16.msra.mxu0 %v1249
    %1289 = vmatprep.subr.bf16.mxu0 0
    %1290 = vmatpush2.bf16.msra.mxu0 0
    %1291 = vmatprep.subr.bf16.mxu0 0
    %1292 = vmatpush2.bf16.msra.mxu0 0
    %1293 = vmatprep.subr.bf16.mxu0 0
    %1294 = vmatpush2.bf16.msra.mxu0 0
    %1295 = vmatprep.subr.bf16.mxu0 0
    %1296 = vmatpush2.bf16.msra.mxu0 0
    %1297 = vmatprep.subr.bf16.mxu0 0
    %1298 = vmatpush2.bf16.msra.mxu0 0
    %1299 = vmatprep.subr.bf16.mxu0 0
    %1300 = vmatpush2.bf16.msra.mxu0 0
    %1301 = vmatprep.subr.bf16.mxu0 0
    %1302 = vmatpush2.bf16.msra.mxu0 0
    %1303 = vmatprep.subr.bf16.mxu0 0
    %1304 = vmatpush2.bf16.msra.mxu0 %v1257
    %1305 = vmatprep.mubr.bf16.mxu0 %v1268
    %1306 = vmatmul.mubr.bf16.gmra.mxu0 %v1011
    %v1307 = vpop.f32.mrf.mxu0
    %v1308 = vadd.f32 %v1199, %v1307
    %v1309 = vpop.f32.mrf.mxu0
    %v1310 = vpop.f32.mrf.mxu0
    %v1311 = vadd.f32 %v1202, %v1310
    %v1312 = vpop.f32.mrf.mxu0
    %1313 = vmatprep.mubr.bf16.mxu0 %v1271
    %1314 = vmatmul.mubr.bf16.gmra.mxu0 %v1013
    %v1315 = vpop.f32.mrf.mxu0
    %v1316 = vadd.f32 %v1207, %v1315
    %v1317 = vpop.f32.mrf.mxu0
    %v1318 = vpop.f32.mrf.mxu0
    %v1319 = vadd.f32 %v1210, %v1318
    %v1320 = vpop.f32.mrf.mxu0
    %1321 = vdwg.mxu0
    %v1322 = vld [vmem:[#allocation2] sm:$0xfc]
    %v1323 = vld [vmem:[#allocation2 + $0x8] sm:$0xfc]
    %v1324 = vld [vmem:[#allocation2 + $0x20] sm:$0x3]
    %v1325 = vld [vmem:[#allocation2 + $0x28] sm:$0x3]
    %v1326 = vld [vmem:[#allocation2 + $0x30] sm:$0xfc]
    %v1327 = vld [vmem:[#allocation2 + $0x38] sm:$0xfc]
    %v1328 = vld [vmem:[#allocation2 + $0x50] sm:$0x3]
    %v1329 = vld [vmem:[#allocation2 + $0x58] sm:$0x3]
    %v1338 = vrot.slane %v1322, 2
    %v1339 = vrot.slane %v1005, 2
    %v1340 = vsel %vm314, %v1338, %v1339
    %v1341 = vrot.slane %v1323, 2
    %v1342 = vrot.slane %v1006, 2
    %v1343 = vsel %vm314, %v1341, %v1342
    %v1344 = vrot.slane %v1324, 2
    %v1345 = vsel %vm314, %v1339, %v1344
    %v1346 = vrot.slane %v1325, 2
    %v1347 = vsel %vm314, %v1342, %v1346
    %v1348 = vrot.slane %v1326, 2
    %v1349 = vrot.slane %v1009, 2
    %v1350 = vsel %vm314, %v1348, %v1349
    %v1351 = vrot.slane %v1327, 2
    %v1352 = vrot.slane %v1010, 2
    %v1353 = vsel %vm314, %v1351, %v1352
    %v1354 = vrot.slane %v1328, 2
    %v1355 = vsel %vm314, %v1349, %v1354
    %v1356 = vrot.slane %v1329, 2
    %v1357 = vsel %vm314, %v1352, %v1356
    %v1366 = vpack.c.bf16 %v1345, %v1340
    %v1367 = vpack.c.bf16 %v1347, %v1343
    %v1368 = vpack.c.bf16 %v1355, %v1350
    %v1369 = vpack.c.bf16 %v1357, %v1353
    %s1370 = scalar_lea.vmem %s5, 144
    %v1371 = vld [vmem:[%s1370] sm:$0xf]
    %v1372 = vld [vmem:[%s1370 + $0x4] sm:$0xf]
    %v1373 = vld [vmem:[%s1370 + $0x8] sm:$0xf]
    %v1374 = vld [vmem:[%s1370 + $0xc] sm:$0xf]
    %v1375 = vld [vmem:[%s1370 + $0x10] sm:$0xf]
    %v1376 = vld [vmem:[%s1370 + $0x14] sm:$0xf]
    %v1377 = vld [vmem:[%s1370 + $0x18] sm:$0xf]
    %v1378 = vld [vmem:[%s1370 + $0x1c] sm:$0xf]
    %v1379 = vld [vmem:[%s1370 + $0x20] sm:$0xf]
    %v1380 = vld [vmem:[%s1370 + $0x24] sm:$0xf]
    %v1381 = vld [vmem:[%s1370 + $0x28] sm:$0xf]
    %v1382 = vld [vmem:[%s1370 + $0x2c] sm:$0xf]
    %v1383 = vld [vmem:[%s1370 + $0x30] sm:$0xf]
    %v1384 = vld [vmem:[%s1370 + $0x34] sm:$0xf]
    %v1385 = vld [vmem:[%s1370 + $0x38] sm:$0xf]
    %v1386 = vld [vmem:[%s1370 + $0x3c] sm:$0xf]
    %v1387 = vld [vmem:[%s1370 + $0x40] sm:$0xf]
    %v1388 = vld [vmem:[%s1370 + $0x44] sm:$0xf]
    %v1407 = vunpack.c.l.b16 %v1371
    %v1408 = vunpack.c.l.b16 %v1372
    %v1409 = vunpack.c.l.b16 %v1373
    %v1410 = vunpack.c.l.b16 %v1374
    %v1411 = vunpack.c.l.b16 %v1375
    %v1412 = vunpack.c.l.b16 %v1376
    %v1413 = vunpack.c.l.b16 %v1377
    %v1414 = vunpack.c.l.b16 %v1378
    %v1415 = vunpack.c.l.b16 %v1379
    %v1416 = vunpack.c.l.b16 %v1380
    %v1417 = vunpack.c.l.b16 %v1381
    %v1418 = vunpack.c.l.b16 %v1382
    %v1419 = vunpack.c.l.b16 %v1383
    %v1420 = vunpack.c.l.b16 %v1384
    %v1421 = vunpack.c.l.b16 %v1385
    %v1422 = vunpack.c.l.b16 %v1386
    %v1423 = vunpack.c.l.b16 %v1387
    %v1424 = vunpack.c.l.b16 %v1388
    %v1425 = vpack.c.b16 %v1408, %v1407
    %v1426 = vpack.c.b16 %v1410, %v1409
    %v1427 = vpack.c.b16 %v1412, %v1411
    %v1428 = vpack.c.b16 %v1414, %v1413
    %v1429 = vpack.c.b16 %v1416, %v1415
    %v1430 = vpack.c.b16 %v1418, %v1417
    %v1431 = vpack.c.b16 %v1420, %v1419
    %v1432 = vpack.c.b16 %v1422, %v1421
    %v1433 = vpack.c.b16 %v1424, %v1423
    %v1444 = vsel %vm42, %v1367, 0
    %v1447 = vsel %vm42, %v1369, 0
    %1449 = vmatprep.subr.bf16.mxu0 0
    %1450 = vmatpush1.bf16.msra.mxu0 %v1432
    %1451 = vmatprep.subr.bf16.mxu0 0
    %1452 = vmatpush1.bf16.msra.mxu0 %v1431
    %1453 = vmatprep.subr.bf16.mxu0 0
    %1454 = vmatpush1.bf16.msra.mxu0 %v1430
    %1455 = vmatprep.subr.bf16.mxu0 0
    %1456 = vmatpush1.bf16.msra.mxu0 %v1429
    %1457 = vmatprep.subr.bf16.mxu0 0
    %1458 = vmatpush1.bf16.msra.mxu0 %v1428
    %1459 = vmatprep.subr.bf16.mxu0 0
    %1460 = vmatpush1.bf16.msra.mxu0 %v1427
    %1461 = vmatprep.subr.bf16.mxu0 0
    %1462 = vmatpush1.bf16.msra.mxu0 %v1426
    %1463 = vmatprep.subr.bf16.mxu0 0
    %1464 = vmatpush1.bf16.msra.mxu0 %v1425
    %1465 = vmatprep.subr.bf16.mxu0 0
    %1466 = vmatpush2.bf16.msra.mxu0 0
    %1467 = vmatprep.subr.bf16.mxu0 0
    %1468 = vmatpush2.bf16.msra.mxu0 0
    %1469 = vmatprep.subr.bf16.mxu0 0
    %1470 = vmatpush2.bf16.msra.mxu0 0
    %1471 = vmatprep.subr.bf16.mxu0 0
    %1472 = vmatpush2.bf16.msra.mxu0 0
    %1473 = vmatprep.subr.bf16.mxu0 0
    %1474 = vmatpush2.bf16.msra.mxu0 0
    %1475 = vmatprep.subr.bf16.mxu0 0
    %1476 = vmatpush2.bf16.msra.mxu0 0
    %1477 = vmatprep.subr.bf16.mxu0 0
    %1478 = vmatpush2.bf16.msra.mxu0 0
    %1479 = vmatprep.subr.bf16.mxu0 0
    %1480 = vmatpush2.bf16.msra.mxu0 %v1433
    %1481 = vmatprep.mubr.bf16.mxu0 %v1444
    %1482 = vmatmul.mubr.bf16.gmra.mxu0 %v1366
    %v1483 = vpop.f32.mrf.mxu0
    %v1484 = vadd.f32 0.0, %v1483
    %v1485 = vpop.f32.mrf.mxu0
    %v1486 = vpop.f32.mrf.mxu0
    %v1487 = vadd.f32 0.0, %v1486
    %v1488 = vpop.f32.mrf.mxu0
    %1489 = vmatprep.mubr.bf16.mxu0 %v1447
    %1490 = vmatmul.mubr.bf16.gmra.mxu0 %v1368
    %v1491 = vpop.f32.mrf.mxu0
    %v1492 = vadd.f32 0.0, %v1491
    %v1493 = vpop.f32.mrf.mxu0
    %v1494 = vpop.f32.mrf.mxu0
    %v1495 = vadd.f32 0.0, %v1494
    %v1496 = vpop.f32.mrf.mxu0
    %1497 = vdwg.mxu0
    %v1498 = vadd.f32 %v1308, %v1484
    %v1499 = vadd.f32 %v1311, %v1487
    %v1500 = vadd.f32 %v1316, %v1492
    %v1501 = vadd.f32 %v1319, %v1495
    %v1502 = vld [vmem:[%s6] sm:$0x1]
    %v1504 = vlaneseq
    %v1505 = vshrl.u32 %v1504, 7
    %v1506 = vsub.s32 0, %v1505
    %v1507 = vrot.slane %v1502, %v1506
    %v1509 = vadd.f32 %v1498, %v1507
    %v1510 = vadd.f32 %v1499, %v1507
    %v1511 = vadd.f32 %v1500, %v1507
    %v1512 = vadd.f32 %v1501, %v1507
    %v1517 = vcombine.high %v1509, %v1509
    %v1519 = vunpack.c.l.s4 1983009808
    %v1520 = vunpack.c.0.s8 %v1519
    %v1521 = vlaneseq
    %v1522 = vshrl.u32 %v1521, 7
    %v1523 = vsub.s32 %v1520, %v1522
    %v1524 = vrot.slane %v1509, %v1523
    %v1526 = vunpack.c.l.s4 1983009808
    %v1527 = vunpack.c.0.s8 %v1526
    %v1528 = vlaneseq
    %v1529 = vshrl.u32 %v1528, 7
    %v1530 = vsub.s32 %v1527, %v1529
    %v1531 = vrot.slane %v1517, %v1530
    %v1532 = vcombine.high %v1524, %v1524
    %v1533 = vcombine.high %v1531, %v1531
    %v1534 = vcombine.high %v1510, %v1510
    %v1536 = vunpack.c.l.s4 1983009808
    %v1537 = vunpack.c.0.s8 %v1536
    %v1538 = vlaneseq
    %v1539 = vshrl.u32 %v1538, 7
    %v1540 = vsub.s32 %v1537, %v1539
    %v1541 = vrot.slane %v1510, %v1540
    %v1543 = vunpack.c.l.s4 1983009808
    %v1544 = vunpack.c.0.s8 %v1543
    %v1545 = vlaneseq
    %v1546 = vshrl.u32 %v1545, 7
    %v1547 = vsub.s32 %v1544, %v1546
    %v1548 = vrot.slane %v1534, %v1547
    %v1549 = vcombine.high %v1541, %v1541
    %v1550 = vcombine.high %v1548, %v1548
    %v1551 = vcombine.high %v1511, %v1511
    %v1553 = vunpack.c.l.s4 1983009808
    %v1554 = vunpack.c.0.s8 %v1553
    %v1555 = vlaneseq
    %v1556 = vshrl.u32 %v1555, 7
    %v1557 = vsub.s32 %v1554, %v1556
    %v1558 = vrot.slane %v1511, %v1557
    %v1560 = vunpack.c.l.s4 1983009808
    %v1561 = vunpack.c.0.s8 %v1560
    %v1562 = vlaneseq
    %v1563 = vshrl.u32 %v1562, 7
    %v1564 = vsub.s32 %v1561, %v1563
    %v1565 = vrot.slane %v1551, %v1564
    %v1566 = vcombine.high %v1558, %v1558
    %v1567 = vcombine.high %v1565, %v1565
    %v1568 = vcombine.high %v1512, %v1512
    %v1570 = vunpack.c.l.s4 1983009808
    %v1571 = vunpack.c.0.s8 %v1570
    %v1572 = vlaneseq
    %v1573 = vshrl.u32 %v1572, 7
    %v1574 = vsub.s32 %v1571, %v1573
    %v1575 = vrot.slane %v1512, %v1574
    %v1577 = vunpack.c.l.s4 1983009808
    %v1578 = vunpack.c.0.s8 %v1577
    %v1579 = vlaneseq
    %v1580 = vshrl.u32 %v1579, 7
    %v1581 = vsub.s32 %v1578, %v1580
    %v1582 = vrot.slane %v1568, %v1581
    %v1583 = vcombine.high %v1575, %v1575
    %v1584 = vcombine.high %v1582, %v1582
    %vm1601 = vcmask 1041408
    %v1602 = vsel %vm1601, %v1524, -inf
    %v1603 = vrot.slane %v1602, 4
    %v1604 = vmax.f32 %v1602, %v1603
    %v1605 = vrot.slane %v1604, 2
    %v1606 = vmax.f32 %v1604, %v1605
    %v1607 = vrot.slane %v1606, 1
    %v1608 = vmax.f32 %v1606, %v1607
    %v1609 = vsel %vm1601, %v1532, -inf
    %v1610 = vrot.slane %v1609, 4
    %v1611 = vmax.f32 %v1609, %v1610
    %v1612 = vrot.slane %v1611, 2
    %v1613 = vmax.f32 %v1611, %v1612
    %v1614 = vrot.slane %v1613, 1
    %v1615 = vmax.f32 %v1613, %v1614
    %v1616 = vsel %vm1601, %v1531, -inf
    %v1617 = vrot.slane %v1616, 4
    %v1618 = vmax.f32 %v1616, %v1617
    %v1619 = vrot.slane %v1618, 2
    %v1620 = vmax.f32 %v1618, %v1619
    %v1621 = vrot.slane %v1620, 1
    %v1622 = vmax.f32 %v1620, %v1621
    %v1623 = vsel %vm1601, %v1533, -inf
    %v1624 = vrot.slane %v1623, 4
    %v1625 = vmax.f32 %v1623, %v1624
    %v1626 = vrot.slane %v1625, 2
    %v1627 = vmax.f32 %v1625, %v1626
    %v1628 = vrot.slane %v1627, 1
    %v1629 = vmax.f32 %v1627, %v1628
    %v1630 = vsel %vm1601, %v1541, -inf
    %v1631 = vrot.slane %v1630, 4
    %v1632 = vmax.f32 %v1630, %v1631
    %v1633 = vrot.slane %v1632, 2
    %v1634 = vmax.f32 %v1632, %v1633
    %v1635 = vrot.slane %v1634, 1
    %v1636 = vmax.f32 %v1634, %v1635
    %v1637 = vsel %vm1601, %v1549, -inf
    %v1638 = vrot.slane %v1637, 4
    %v1639 = vmax.f32 %v1637, %v1638
    %v1640 = vrot.slane %v1639, 2
    %v1641 = vmax.f32 %v1639, %v1640
    %v1642 = vrot.slane %v1641, 1
    %v1643 = vmax.f32 %v1641, %v1642
    %v1644 = vsel %vm1601, %v1548, -inf
    %v1645 = vrot.slane %v1644, 4
    %v1646 = vmax.f32 %v1644, %v1645
    %v1647 = vrot.slane %v1646, 2
    %v1648 = vmax.f32 %v1646, %v1647
    %v1649 = vrot.slane %v1648, 1
    %v1650 = vmax.f32 %v1648, %v1649
    %v1651 = vsel %vm1601, %v1550, -inf
    %v1652 = vrot.slane %v1651, 4
    %v1653 = vmax.f32 %v1651, %v1652
    %v1654 = vrot.slane %v1653, 2
    %v1655 = vmax.f32 %v1653, %v1654
    %v1656 = vrot.slane %v1655, 1
    %v1657 = vmax.f32 %v1655, %v1656
    %v1658 = vsel %vm1601, %v1558, -inf
    %v1659 = vrot.slane %v1658, 4
    %v1660 = vmax.f32 %v1658, %v1659
    %v1661 = vrot.slane %v1660, 2
    %v1662 = vmax.f32 %v1660, %v1661
    %v1663 = vrot.slane %v1662, 1
    %v1664 = vmax.f32 %v1662, %v1663
    %v1665 = vsel %vm1601, %v1566, -inf
    %v1666 = vrot.slane %v1665, 4
    %v1667 = vmax.f32 %v1665, %v1666
    %v1668 = vrot.slane %v1667, 2
    %v1669 = vmax.f32 %v1667, %v1668
    %v1670 = vrot.slane %v1669, 1
    %v1671 = vmax.f32 %v1669, %v1670
    %v1672 = vsel %vm1601, %v1565, -inf
    %v1673 = vrot.slane %v1672, 4
    %v1674 = vmax.f32 %v1672, %v1673
    %v1675 = vrot.slane %v1674, 2
    %v1676 = vmax.f32 %v1674, %v1675
    %v1677 = vrot.slane %v1676, 1
    %v1678 = vmax.f32 %v1676, %v1677
    %v1679 = vsel %vm1601, %v1567, -inf
    %v1680 = vrot.slane %v1679, 4
    %v1681 = vmax.f32 %v1679, %v1680
    %v1682 = vrot.slane %v1681, 2
    %v1683 = vmax.f32 %v1681, %v1682
    %v1684 = vrot.slane %v1683, 1
    %v1685 = vmax.f32 %v1683, %v1684
    %v1686 = vsel %vm1601, %v1575, -inf
    %v1687 = vrot.slane %v1686, 4
    %v1688 = vmax.f32 %v1686, %v1687
    %v1689 = vrot.slane %v1688, 2
    %v1690 = vmax.f32 %v1688, %v1689
    %v1691 = vrot.slane %v1690, 1
    %v1692 = vmax.f32 %v1690, %v1691
    %v1693 = vsel %vm1601, %v1583, -inf
    %v1694 = vrot.slane %v1693, 4
    %v1695 = vmax.f32 %v1693, %v1694
    %v1696 = vrot.slane %v1695, 2
    %v1697 = vmax.f32 %v1695, %v1696
    %v1698 = vrot.slane %v1697, 1
    %v1699 = vmax.f32 %v1697, %v1698
    %v1700 = vsel %vm1601, %v1582, -inf
    %v1701 = vrot.slane %v1700, 4
    %v1702 = vmax.f32 %v1700, %v1701
    %v1703 = vrot.slane %v1702, 2
    %v1704 = vmax.f32 %v1702, %v1703
    %v1705 = vrot.slane %v1704, 1
    %v1706 = vmax.f32 %v1704, %v1705
    %v1707 = vsel %vm1601, %v1584, -inf
    %v1708 = vrot.slane %v1707, 4
    %v1709 = vmax.f32 %v1707, %v1708
    %v1710 = vrot.slane %v1709, 2
    %v1711 = vmax.f32 %v1709, %v1710
    %v1712 = vrot.slane %v1711, 1
    %v1713 = vmax.f32 %v1711, %v1712
    %vm1730 = vcmask 1041409
    %v1731 = vsel %vm1730, %v1615, %v1608
    %vm1732 = vcmask 1042434
    %v1733 = vsel %vm1732, %v1622, %v1731
    %vm1734 = vcmask 1043459
    %v1735 = vsel %vm1734, %v1629, %v1733
    %vm1736 = vcmask 1044484
    %v1737 = vsel %vm1736, %v1636, %v1735
    %vm1738 = vcmask 1045509
    %v1739 = vsel %vm1738, %v1643, %v1737
    %vm1740 = vcmask 1046534
    %v1741 = vsel %vm1740, %v1650, %v1739
    %vm1742 = vcmask 1047559
    %v1743 = vsel %vm1742, %v1657, %v1741
    %v1744 = vsel %vm1730, %v1671, %v1664
    %v1745 = vsel %vm1732, %v1678, %v1744
    %v1746 = vsel %vm1734, %v1685, %v1745
    %v1747 = vsel %vm1736, %v1692, %v1746
    %v1748 = vsel %vm1738, %v1699, %v1747
    %v1749 = vsel %vm1740, %v1706, %v1748
    %v1750 = vsel %vm1742, %v1713, %v1749
    %1753 = vst [vmem:[%s7] sm:$0xff] %v1743
    %1754 = vst [vmem:[%s7 + $0x8] sm:$0xff] %v1750
    // Predicated region
    $region34: #{uencoder_forward.1} parent=1 // pred_check
      _
    $region35: #{uencoder_forward.1} parent=1 // pred_check_branch
      %1756 = sbr.rel (0) target = $region37
    $region36: #{uencoder_forward.1} parent=1 // pred_region
      _
    $region37: #{uencoder_forward.1} parent=1 // pred_fallthru
      _
    // Predicated region
    $region38: #{uencoder_forward.1} parent=1 // pred_check
      _
    $region39: #{uencoder_forward.1} parent=1 // pred_check_branch
      %1758 = sbr.rel (0) target = $region41
    $region40: #{uencoder_forward.1} parent=1 // pred_region
      _
    $region41: #{uencoder_forward.1} parent=1 // pred_fallthru
      _
    %1759 = vsyncpa [#allocation4], 1

</llo_original>
